<compile_context>
chip_gen: v5e
topology: v5e:2x2
jax: 0.10.0
libtpu: 0.0.40
codegen_flags: <defaults>
</compile_context>

<pallas_src>
import jax
import jax.numpy as jnp
from jax import lax
from jax.experimental import pallas as pl
from jax.experimental.pallas import tpu as pltpu


def _round_up(x, m):
    return ((x + m - 1) // m) * m


def _make_kernel(n_batch, c_in, c_out, k, w_out, margin, out_len, use_bias):
    """One grid step = one pyramid level, all batch elements at once."""
    t_taps = k * k

    def kernel(lvl_ref, wcw_ref, wcb_ref, x_ref, o_ref, tmp_ref):
        # lvl_ref : (L,)                       SMEM  f32 level scalars
        # wcw_ref : (K*K*C_out+1, C_in*N, 1)   VMEM  fc.weight columns (last = bias col)
        # wcb_ref : (K*K*C_out+1, C_in*N, 1)   VMEM  fc.bias   columns (last = bias col)
        # x_ref   : (1, C_in*N, ROW_LEN)       VMEM  margin-packed flattened inputs
        # o_ref   : (1, C_out*N, OUT_LEN)      VMEM  flattened full conv-transpose outputs
        # tmp_ref : (C_in*N, OUT_LEN)          VMEM  scratch for the ci-group reduction
        lvl = lvl_ref[pl.program_id(0)]

        rows_in = c_in * n_batch
        acc = [jnp.zeros((rows_in, out_len), jnp.float32) for _ in range(c_out)]

        # conv_transpose2d (stride=1, dilation=1) in scatter form on the shared
        # flattened (H_out, W_out) plane: a (kh, kw) tap is a single flat lane offset
        # and the zero margins absorb every out-of-range position, so each tap is one
        # contiguous, full-width, full-sublane load reused for all channels.
        for kh in range(k):
            for kw in range(k):
                t = kh * k + kw
                start = margin - (kh * w_out + kw)            # static, >= 0
                slab = x_ref[0, :, pl.ds(start, out_len)]      # (C_in*N, OUT_LEN), 1 load/tap
                for co in range(c_out):
                    j = t * c_out + co
                    # hyper-generated weight column for this (tap, co):
                    #   w_col[ci*N + n] = fc_w[idx(ci,co,kh,kw)] * level + fc_b[idx]
                    w_col = wcw_ref[j] * lvl + wcb_ref[j]      # (C_in*N, 1) vector FMA
                    acc[co] = acc[co] + w_col * slab           # full 8-sublane f32 FMA

        # Epilogue (once per level): reduce the C_in groups of each accumulator to the
        # N batch rows of output channel co (scratch-ref slicing), assemble the single
        # (C_out*N, OUT_LEN) block, add the hyper-generated bias column, store once.
        out_rows = []
        for co in range(c_out):
            tmp_ref[...] = acc[co]
            red = tmp_ref[pl.ds(0, n_batch), :]
            for ci in range(1, c_in):
                red = red + tmp_ref[pl.ds(ci * n_batch, n_batch), :]
            out_rows.append(red)
        out = jnp.concatenate(out_rows, axis=0)                # (C_out*N, OUT_LEN)
        if use_bias:
            out = out + (wcw_ref[t_taps * c_out] * lvl + wcb_ref[t_taps * c_out])
        o_ref[0] = out.astype(o_ref.dtype)                     # single unmasked store

    return kernel


def hyper_conv_transpose(xs, levels, fc_w, fc_b, *, in_channels, out_channels,
                         kernel_size, stride=1, padding=0, dilation=1,
                         use_bias=True):
    """JAX/Pallas equivalent of HyperConvTranspose.forward (xs: one array per level)."""
    assert stride == 1 and dilation == 1  # TODO(synk): stride/dilation > 1 unimplemented
    # conv_transpose2d reads the hyper-generated (out,in,K,K) tensor with dim0 as the
    # *input* channels; that only lines up when in_channels == out_channels.
    assert in_channels == out_channels
    assert len(xs) == len(levels) and len(xs) >= 1
    K = kernel_size
    C = in_channels
    L = len(xs)
    N = int(xs[0].shape[0])
    for x in xs:
        assert int(x.shape[0]) == N and int(x.shape[1]) == C
    dtype = xs[0].dtype
    w_len = C * C * K * K
    R = C * N
    T = K * K

    # Shared full (uncropped) conv-transpose plane sized for the largest level.
    H_max = max(int(x.shape[2]) for x in xs)
    W_max = max(int(x.shape[3]) for x in xs)
    HO, WO = H_max + K - 1, W_max + K - 1
    S = HO * WO
    OUT_LEN = _round_up(S, 128)                  # lane-dense output rows
    MARGIN = (K - 1) * (WO + 1)                  # max flat tap shift
    ROW_LEN = _round_up(MARGIN + OUT_LEN, 128)   # lane-dense packed input rows

    # Pack all levels into one (L, C*N, ROW_LEN) slab: zero-embed each image at the
    # top-left of the shared (HO, WO) plane, flatten, add the left margin.  This glue
    # fuses into a surrounding jit.  TODO(synk): in-kernel DMA embedding and per-size
    # bucketing so small levels don't pay max-level-sized work on deep pyramids.
    planes = []
    for x in xs:
        h, w = int(x.shape[2]), int(x.shape[3])
        xt = jnp.transpose(x, (1, 0, 2, 3)).astype(jnp.float32)        # (C, N, H, W)
        emb = jnp.pad(xt, ((0, 0), (0, 0), (0, HO - h), (0, WO - w)))
        flat = emb.reshape(R, S)
        planes.append(jnp.pad(flat, ((0, 0), (MARGIN, ROW_LEN - MARGIN - S))))
    X = jnp.stack(planes, axis=0)

    lvls = jnp.asarray(levels, dtype=jnp.float32)
    fcw_flat = jnp.asarray(fc_w, jnp.float32).reshape(-1)
    fcb_flat = jnp.asarray(fc_b, jnp.float32).reshape(-1)

    # Pre-arrange fc parameters as lane-broadcastable columns so in-kernel hyper-weight
    # generation is one vector FMA per (tap, co):
    #   cols[t*C_out + co, ci*N + n, 0] = fc_param[idx(ci, co, kh, kw)],  t = kh*K + kw
    # plus one trailing bias column  cols[T*C_out, co*N + n, 0] = fc_param[w_len + co].
    def make_cols(flat):
        wt = flat[:w_len].reshape(C, C, K, K)                     # [ci, co, kh, kw]
        cols = jnp.transpose(wt, (2, 3, 1, 0)).reshape(T * C, C)  # [(t,co), ci]
        cols = jnp.repeat(cols, N, axis=1)                        # [(t,co), ci*N+n]
        if use_bias:
            b = jnp.repeat(flat[w_len:w_len + C], N)[None, :]     # [1, co*N+n]
        else:
            b = jnp.zeros((1, R), jnp.float32)
        return jnp.concatenate([cols, b], axis=0).reshape(T * C + 1, R, 1)

    wcw_cols = make_cols(fcw_flat)
    wcb_cols = make_cols(fcb_flat)

    kern = _make_kernel(N, C, C, K, WO, MARGIN, OUT_LEN, use_bias)

    out_all = pl.pallas_call(
        kern,
        out_shape=jax.ShapeDtypeStruct((L, R, OUT_LEN), dtype),
        grid=(L,),
        in_specs=[
            pl.BlockSpec(memory_space=pltpu.MemorySpace.SMEM),        # level scalars
            pl.BlockSpec((T * C + 1, R, 1), lambda l: (0, 0, 0)),     # fc.weight cols
            pl.BlockSpec((T * C + 1, R, 1), lambda l: (0, 0, 0)),     # fc.bias cols
            pl.BlockSpec((1, R, ROW_LEN), lambda l: (l, 0, 0)),       # packed inputs
        ],
        out_specs=pl.BlockSpec((1, R, OUT_LEN), lambda l: (l, 0, 0)),
        scratch_shapes=[pltpu.VMEM((R, OUT_LEN), jnp.float32)],
        compiler_params=pltpu.CompilerParams(
            # One pyramid level per grid step; L>=2 keeps both v7x TensorCores busy.
            # TODO(synk): for L==1, add a second parallel axis (split rows or plane).
            dimension_semantics=("parallel",)),
    )(lvls, wcw_cols, wcb_cols, X)

    # Unpack: crop each level's valid (H+K-1-2p, W+K-1-2p) window back to NCHW.
    # NOTE: out_all lanes beyond S (and the structural-pad region) hold garbage partial
    # sums + bias and must never be consumed directly; they are cropped here.
    outs = []
    for i, x in enumerate(xs):
        h, w = int(x.shape[2]), int(x.shape[3])
        ho = h + K - 1 - 2 * padding
        wo = w + K - 1 - 2 * padding
        o = out_all[i, :, :S].reshape(C, N, HO, WO)        # rows are co*N + n
        o = jnp.transpose(o, (1, 0, 2, 3))
        outs.append(o[:, :, padding:padding + ho, padding:padding + wo])
    return outs


def ref_conv_transpose(x, W_ct, bias, padding=0):
    """Plain-JAX reference implementing F.conv_transpose2d semantics directly."""
    n, c_in, H, W = x.shape
    _, c_out, K, _ = W_ct.shape  # W_ct[ci, co, kh, kw]
    out = jnp.zeros((n, c_out, H + K - 1, W + K - 1), jnp.float32)
    for kh in range(K):
        for kw in range(K):
            contrib = jnp.einsum('nchw,cd->ndhw', x, W_ct[:, :, kh, kw],
                                 precision=lax.Precision.HIGHEST)
            out = out.at[:, :, kh:kh + H, kw:kw + W].add(contrib)
    if padding > 0:
        out = out[:, :, padding:-padding, padding:-padding]
    return out + bias[None, :, None, None]


if __name__ == "__main__":
    key = jax.random.PRNGKey(0)
    C_in = C_out = 4          # module only actually runs when in_channels == out_channels
    K = 3
    levels = [1, 2]
    N = 2

    # nn.Linear(1, out_channels * (in_channels*K^2 + 1)) parameters (deterministic init)
    F_out = C_out * (C_in * K * K + 1)
    k1, k2, k3, k4 = jax.random.split(key, 4)
    fc_w = jax.random.uniform(k1, (F_out, 1), jnp.float32, -1.0, 1.0)
    fc_b = jax.random.uniform(k2, (F_out,), jnp.float32, -1.0, 1.0)

    # one feature map per pyramid level, NCHW
    xs = [
        jax.random.normal(k3, (N, C_in, 16, 16), jnp.float32),
        jax.random.normal(k4, (N, C_in, 8, 8), jnp.float32),
    ]

    outs = hyper_conv_transpose(xs, levels, fc_w, fc_b,
                                in_channels=C_in, out_channels=C_out,
                                kernel_size=K)
    outs = [jax.block_until_ready(o) for o in outs]

    # sanity check against a plain-JAX implementation of conv_transpose2d
    w_len = C_in * C_out * K * K
    for x, lvl, o in zip(xs, levels, outs):
        tot = fc_w[:, 0] * jnp.float32(lvl) + fc_b
        W_ct = tot[:w_len].reshape(C_out, C_in, K, K)
        bias = tot[w_len:]
        ref = ref_conv_transpose(x, W_ct, bias)
        assert o.shape == ref.shape, (o.shape, ref.shape)
        err = float(jnp.max(jnp.abs(o - ref)))
        assert err < 2e-4, err

    print("KERNEL_OK")
</pallas_src>

<mosaic_0001>
module attributes {stable_mosaic.version = 11 : i64} {
  func.func @kernel(%arg0: i32, %arg1: memref<2xf32, #tpu.memory_space<smem>>, %arg2: memref<37x8x1xf32, #tpu.memory_space<vmem>>, %arg3: memref<37x8x1xf32, #tpu.memory_space<vmem>>, %arg4: memref<1x8x512xf32, #tpu.memory_space<vmem>>, %arg5: memref<1x8x384xf32, #tpu.memory_space<vmem>>, %arg6: memref<8x384xf32, #tpu.memory_space<vmem>>) attributes {dimension_semantics = [#tpu.dimension_semantics<parallel>], iteration_bounds = array<i64: 2>, scalar_prefetch = 0 : i64, scratch_operands = 1 : i64, tpu.core_type = #tpu.core_type<tc>, window_params = [{transform_indices = @transform_0, window_bounds = array<i64: 2>}, {pipeline_mode = #tpu.pipeline_mode<synchronous>, transform_indices = @transform_1, window_bounds = array<i64: 37, 8, 1>}, {pipeline_mode = #tpu.pipeline_mode<synchronous>, transform_indices = @transform_2, window_bounds = array<i64: 37, 8, 1>}, {transform_indices = @transform_3, window_bounds = array<i64: 1, 8, 512>}, {transform_indices = @transform_4, window_bounds = array<i64: 1, 8, 384>}]} {
    %0 = arith.index_cast %arg0 : i32 to index
    %1 = memref.load %arg1[%0] : memref<2xf32, #tpu.memory_space<smem>>
    %cst = arith.constant 0.000000e+00 : f32
    %2 = vector.broadcast %cst : f32 to vector<8x384xf32>
    %cst_0 = arith.constant 0.000000e+00 : f32
    %3 = vector.broadcast %cst_0 : f32 to vector<8x384xf32>
    %cst_1 = arith.constant 0.000000e+00 : f32
    %4 = vector.broadcast %cst_1 : f32 to vector<8x384xf32>
    %cst_2 = arith.constant 0.000000e+00 : f32
    %5 = vector.broadcast %cst_2 : f32 to vector<8x384xf32>
    %c0 = arith.constant 0 : index
    %c0_3 = arith.constant 0 : index
    %c38 = arith.constant 38 : index
    %6 = vector.load %arg4[%c0, %c0_3, %c38] : memref<1x8x512xf32, #tpu.memory_space<vmem>>, vector<1x8x384xf32>
    %7 = vector.shape_cast %6 : vector<1x8x384xf32> to vector<8x384xf32>
    %c0_4 = arith.constant 0 : index
    %c0_5 = arith.constant 0 : index
    %c0_6 = arith.constant 0 : index
    %8 = vector.load %arg2[%c0_4, %c0_5, %c0_6] : memref<37x8x1xf32, #tpu.memory_space<vmem>>, vector<1x8x1xf32>
    %9 = vector.shape_cast %8 : vector<1x8x1xf32> to vector<8x1xf32>
    %10 = vector.broadcast %1 : f32 to vector<8x1xf32>
    %11 = arith.mulf %9, %10 : vector<8x1xf32>
    %c0_7 = arith.constant 0 : index
    %c0_8 = arith.constant 0 : index
    %c0_9 = arith.constant 0 : index
    %12 = vector.load %arg3[%c0_7, %c0_8, %c0_9] : memref<37x8x1xf32, #tpu.memory_space<vmem>>, vector<1x8x1xf32>
    %13 = vector.shape_cast %12 : vector<1x8x1xf32> to vector<8x1xf32>
    %14 = arith.addf %11, %13 : vector<8x1xf32>
    %15 = vector.broadcast %14 : vector<8x1xf32> to vector<8x384xf32>
    %16 = arith.mulf %15, %7 : vector<8x384xf32>
    %17 = arith.addf %2, %16 : vector<8x384xf32>
    %c1 = arith.constant 1 : index
    %c0_10 = arith.constant 0 : index
    %c0_11 = arith.constant 0 : index
    %18 = vector.load %arg2[%c1, %c0_10, %c0_11] : memref<37x8x1xf32, #tpu.memory_space<vmem>>, vector<1x8x1xf32>
    %19 = vector.shape_cast %18 : vector<1x8x1xf32> to vector<8x1xf32>
    %20 = vector.broadcast %1 : f32 to vector<8x1xf32>
    %21 = arith.mulf %19, %20 : vector<8x1xf32>
    %c1_12 = arith.constant 1 : index
    %c0_13 = arith.constant 0 : index
    %c0_14 = arith.constant 0 : index
    %22 = vector.load %arg3[%c1_12, %c0_13, %c0_14] : memref<37x8x1xf32, #tpu.memory_space<vmem>>, vector<1x8x1xf32>
    %23 = vector.shape_cast %22 : vector<1x8x1xf32> to vector<8x1xf32>
    %24 = arith.addf %21, %23 : vector<8x1xf32>
    %25 = vector.broadcast %24 : vector<8x1xf32> to vector<8x384xf32>
    %26 = arith.mulf %25, %7 : vector<8x384xf32>
    %27 = arith.addf %3, %26 : vector<8x384xf32>
    %c2 = arith.constant 2 : index
    %c0_15 = arith.constant 0 : index
    %c0_16 = arith.constant 0 : index
    %28 = vector.load %arg2[%c2, %c0_15, %c0_16] : memref<37x8x1xf32, #tpu.memory_space<vmem>>, vector<1x8x1xf32>
    %29 = vector.shape_cast %28 : vector<1x8x1xf32> to vector<8x1xf32>
    %30 = vector.broadcast %1 : f32 to vector<8x1xf32>
    %31 = arith.mulf %29, %30 : vector<8x1xf32>
    %c2_17 = arith.constant 2 : index
    %c0_18 = arith.constant 0 : index
    %c0_19 = arith.constant 0 : index
    %32 = vector.load %arg3[%c2_17, %c0_18, %c0_19] : memref<37x8x1xf32, #tpu.memory_space<vmem>>, vector<1x8x1xf32>
    %33 = vector.shape_cast %32 : vector<1x8x1xf32> to vector<8x1xf32>
    %34 = arith.addf %31, %33 : vector<8x1xf32>
    %35 = vector.broadcast %34 : vector<8x1xf32> to vector<8x384xf32>
    %36 = arith.mulf %35, %7 : vector<8x384xf32>
    %37 = arith.addf %4, %36 : vector<8x384xf32>
    %c3 = arith.constant 3 : index
    %c0_20 = arith.constant 0 : index
    %c0_21 = arith.constant 0 : index
    %38 = vector.load %arg2[%c3, %c0_20, %c0_21] : memref<37x8x1xf32, #tpu.memory_space<vmem>>, vector<1x8x1xf32>
    %39 = vector.shape_cast %38 : vector<1x8x1xf32> to vector<8x1xf32>
    %40 = vector.broadcast %1 : f32 to vector<8x1xf32>
    %41 = arith.mulf %39, %40 : vector<8x1xf32>
    %c3_22 = arith.constant 3 : index
    %c0_23 = arith.constant 0 : index
    %c0_24 = arith.constant 0 : index
    %42 = vector.load %arg3[%c3_22, %c0_23, %c0_24] : memref<37x8x1xf32, #tpu.memory_space<vmem>>, vector<1x8x1xf32>
    %43 = vector.shape_cast %42 : vector<1x8x1xf32> to vector<8x1xf32>
    %44 = arith.addf %41, %43 : vector<8x1xf32>
    %45 = vector.broadcast %44 : vector<8x1xf32> to vector<8x384xf32>
    %46 = arith.mulf %45, %7 : vector<8x384xf32>
    %47 = arith.addf %5, %46 : vector<8x384xf32>
    %c0_25 = arith.constant 0 : index
    %c0_26 = arith.constant 0 : index
    %c37 = arith.constant 37 : index
    %48 = vector.load %arg4[%c0_25, %c0_26, %c37] : memref<1x8x512xf32, #tpu.memory_space<vmem>>, vector<1x8x384xf32>
    %49 = vector.shape_cast %48 : vector<1x8x384xf32> to vector<8x384xf32>
    %c4 = arith.constant 4 : index
    %c0_27 = arith.constant 0 : index
    %c0_28 = arith.constant 0 : index
    %50 = vector.load %arg2[%c4, %c0_27, %c0_28] : memref<37x8x1xf32, #tpu.memory_space<vmem>>, vector<1x8x1xf32>
    %51 = vector.shape_cast %50 : vector<1x8x1xf32> to vector<8x1xf32>
    %52 = vector.broadcast %1 : f32 to vector<8x1xf32>
    %53 = arith.mulf %51, %52 : vector<8x1xf32>
    %c4_29 = arith.constant 4 : index
    %c0_30 = arith.constant 0 : index
    %c0_31 = arith.constant 0 : index
    %54 = vector.load %arg3[%c4_29, %c0_30, %c0_31] : memref<37x8x1xf32, #tpu.memory_space<vmem>>, vector<1x8x1xf32>
    %55 = vector.shape_cast %54 : vector<1x8x1xf32> to vector<8x1xf32>
    %56 = arith.addf %53, %55 : vector<8x1xf32>
    %57 = vector.broadcast %56 : vector<8x1xf32> to vector<8x384xf32>
    %58 = arith.mulf %57, %49 : vector<8x384xf32>
    %59 = arith.addf %17, %58 : vector<8x384xf32>
    %c5 = arith.constant 5 : index
    %c0_32 = arith.constant 0 : index
    %c0_33 = arith.constant 0 : index
    %60 = vector.load %arg2[%c5, %c0_32, %c0_33] : memref<37x8x1xf32, #tpu.memory_space<vmem>>, vector<1x8x1xf32>
    %61 = vector.shape_cast %60 : vector<1x8x1xf32> to vector<8x1xf32>
    %62 = vector.broadcast %1 : f32 to vector<8x1xf32>
    %63 = arith.mulf %61, %62 : vector<8x1xf32>
    %c5_34 = arith.constant 5 : index
    %c0_35 = arith.constant 0 : index
    %c0_36 = arith.constant 0 : index
    %64 = vector.load %arg3[%c5_34, %c0_35, %c0_36] : memref<37x8x1xf32, #tpu.memory_space<vmem>>, vector<1x8x1xf32>
    %65 = vector.shape_cast %64 : vector<1x8x1xf32> to vector<8x1xf32>
    %66 = arith.addf %63, %65 : vector<8x1xf32>
    %67 = vector.broadcast %66 : vector<8x1xf32> to vector<8x384xf32>
    %68 = arith.mulf %67, %49 : vector<8x384xf32>
    %69 = arith.addf %27, %68 : vector<8x384xf32>
    %c6 = arith.constant 6 : index
    %c0_37 = arith.constant 0 : index
    %c0_38 = arith.constant 0 : index
    %70 = vector.load %arg2[%c6, %c0_37, %c0_38] : memref<37x8x1xf32, #tpu.memory_space<vmem>>, vector<1x8x1xf32>
    %71 = vector.shape_cast %70 : vector<1x8x1xf32> to vector<8x1xf32>
    %72 = vector.broadcast %1 : f32 to vector<8x1xf32>
    %73 = arith.mulf %71, %72 : vector<8x1xf32>
    %c6_39 = arith.constant 6 : index
    %c0_40 = arith.constant 0 : index
    %c0_41 = arith.constant 0 : index
    %74 = vector.load %arg3[%c6_39, %c0_40, %c0_41] : memref<37x8x1xf32, #tpu.memory_space<vmem>>, vector<1x8x1xf32>
    %75 = vector.shape_cast %74 : vector<1x8x1xf32> to vector<8x1xf32>
    %76 = arith.addf %73, %75 : vector<8x1xf32>
    %77 = vector.broadcast %76 : vector<8x1xf32> to vector<8x384xf32>
    %78 = arith.mulf %77, %49 : vector<8x384xf32>
    %79 = arith.addf %37, %78 : vector<8x384xf32>
    %c7 = arith.constant 7 : index
    %c0_42 = arith.constant 0 : index
    %c0_43 = arith.constant 0 : index
    %80 = vector.load %arg2[%c7, %c0_42, %c0_43] : memref<37x8x1xf32, #tpu.memory_space<vmem>>, vector<1x8x1xf32>
    %81 = vector.shape_cast %80 : vector<1x8x1xf32> to vector<8x1xf32>
    %82 = vector.broadcast %1 : f32 to vector<8x1xf32>
    %83 = arith.mulf %81, %82 : vector<8x1xf32>
    %c7_44 = arith.constant 7 : index
    %c0_45 = arith.constant 0 : index
    %c0_46 = arith.constant 0 : index
    %84 = vector.load %arg3[%c7_44, %c0_45, %c0_46] : memref<37x8x1xf32, #tpu.memory_space<vmem>>, vector<1x8x1xf32>
    %85 = vector.shape_cast %84 : vector<1x8x1xf32> to vector<8x1xf32>
    %86 = arith.addf %83, %85 : vector<8x1xf32>
    %87 = vector.broadcast %86 : vector<8x1xf32> to vector<8x384xf32>
    %88 = arith.mulf %87, %49 : vector<8x384xf32>
    %89 = arith.addf %47, %88 : vector<8x384xf32>
    %c0_47 = arith.constant 0 : index
    %c0_48 = arith.constant 0 : index
    %c36 = arith.constant 36 : index
    %90 = vector.load %arg4[%c0_47, %c0_48, %c36] : memref<1x8x512xf32, #tpu.memory_space<vmem>>, vector<1x8x384xf32>
    %91 = vector.shape_cast %90 : vector<1x8x384xf32> to vector<8x384xf32>
    %c8 = arith.constant 8 : index
    %c0_49 = arith.constant 0 : index
    %c0_50 = arith.constant 0 : index
    %92 = vector.load %arg2[%c8, %c0_49, %c0_50] : memref<37x8x1xf32, #tpu.memory_space<vmem>>, vector<1x8x1xf32>
    %93 = vector.shape_cast %92 : vector<1x8x1xf32> to vector<8x1xf32>
    %94 = vector.broadcast %1 : f32 to vector<8x1xf32>
    %95 = arith.mulf %93, %94 : vector<8x1xf32>
    %c8_51 = arith.constant 8 : index
    %c0_52 = arith.constant 0 : index
    %c0_53 = arith.constant 0 : index
    %96 = vector.load %arg3[%c8_51, %c0_52, %c0_53] : memref<37x8x1xf32, #tpu.memory_space<vmem>>, vector<1x8x1xf32>
    %97 = vector.shape_cast %96 : vector<1x8x1xf32> to vector<8x1xf32>
    %98 = arith.addf %95, %97 : vector<8x1xf32>
    %99 = vector.broadcast %98 : vector<8x1xf32> to vector<8x384xf32>
    %100 = arith.mulf %99, %91 : vector<8x384xf32>
    %101 = arith.addf %59, %100 : vector<8x384xf32>
    %c9 = arith.constant 9 : index
    %c0_54 = arith.constant 0 : index
    %c0_55 = arith.constant 0 : index
    %102 = vector.load %arg2[%c9, %c0_54, %c0_55] : memref<37x8x1xf32, #tpu.memory_space<vmem>>, vector<1x8x1xf32>
    %103 = vector.shape_cast %102 : vector<1x8x1xf32> to vector<8x1xf32>
    %104 = vector.broadcast %1 : f32 to vector<8x1xf32>
    %105 = arith.mulf %103, %104 : vector<8x1xf32>
    %c9_56 = arith.constant 9 : index
    %c0_57 = arith.constant 0 : index
    %c0_58 = arith.constant 0 : index
    %106 = vector.load %arg3[%c9_56, %c0_57, %c0_58] : memref<37x8x1xf32, #tpu.memory_space<vmem>>, vector<1x8x1xf32>
    %107 = vector.shape_cast %106 : vector<1x8x1xf32> to vector<8x1xf32>
    %108 = arith.addf %105, %107 : vector<8x1xf32>
    %109 = vector.broadcast %108 : vector<8x1xf32> to vector<8x384xf32>
    %110 = arith.mulf %109, %91 : vector<8x384xf32>
    %111 = arith.addf %69, %110 : vector<8x384xf32>
    %c10 = arith.constant 10 : index
    %c0_59 = arith.constant 0 : index
    %c0_60 = arith.constant 0 : index
    %112 = vector.load %arg2[%c10, %c0_59, %c0_60] : memref<37x8x1xf32, #tpu.memory_space<vmem>>, vector<1x8x1xf32>
    %113 = vector.shape_cast %112 : vector<1x8x1xf32> to vector<8x1xf32>
    %114 = vector.broadcast %1 : f32 to vector<8x1xf32>
    %115 = arith.mulf %113, %114 : vector<8x1xf32>
    %c10_61 = arith.constant 10 : index
    %c0_62 = arith.constant 0 : index
    %c0_63 = arith.constant 0 : index
    %116 = vector.load %arg3[%c10_61, %c0_62, %c0_63] : memref<37x8x1xf32, #tpu.memory_space<vmem>>, vector<1x8x1xf32>
    %117 = vector.shape_cast %116 : vector<1x8x1xf32> to vector<8x1xf32>
    %118 = arith.addf %115, %117 : vector<8x1xf32>
    %119 = vector.broadcast %118 : vector<8x1xf32> to vector<8x384xf32>
    %120 = arith.mulf %119, %91 : vector<8x384xf32>
    %121 = arith.addf %79, %120 : vector<8x384xf32>
    %c11 = arith.constant 11 : index
    %c0_64 = arith.constant 0 : index
    %c0_65 = arith.constant 0 : index
    %122 = vector.load %arg2[%c11, %c0_64, %c0_65] : memref<37x8x1xf32, #tpu.memory_space<vmem>>, vector<1x8x1xf32>
    %123 = vector.shape_cast %122 : vector<1x8x1xf32> to vector<8x1xf32>
    %124 = vector.broadcast %1 : f32 to vector<8x1xf32>
    %125 = arith.mulf %123, %124 : vector<8x1xf32>
    %c11_66 = arith.constant 11 : index
    %c0_67 = arith.constant 0 : index
    %c0_68 = arith.constant 0 : index
    %126 = vector.load %arg3[%c11_66, %c0_67, %c0_68] : memref<37x8x1xf32, #tpu.memory_space<vmem>>, vector<1x8x1xf32>
    %127 = vector.shape_cast %126 : vector<1x8x1xf32> to vector<8x1xf32>
    %128 = arith.addf %125, %127 : vector<8x1xf32>
    %129 = vector.broadcast %128 : vector<8x1xf32> to vector<8x384xf32>
    %130 = arith.mulf %129, %91 : vector<8x384xf32>
    %131 = arith.addf %89, %130 : vector<8x384xf32>
    %c0_69 = arith.constant 0 : index
    %c0_70 = arith.constant 0 : index
    %c20 = arith.constant 20 : index
    %132 = vector.load %arg4[%c0_69, %c0_70, %c20] : memref<1x8x512xf32, #tpu.memory_space<vmem>>, vector<1x8x384xf32>
    %133 = vector.shape_cast %132 : vector<1x8x384xf32> to vector<8x384xf32>
    %c12 = arith.constant 12 : index
    %c0_71 = arith.constant 0 : index
    %c0_72 = arith.constant 0 : index
    %134 = vector.load %arg2[%c12, %c0_71, %c0_72] : memref<37x8x1xf32, #tpu.memory_space<vmem>>, vector<1x8x1xf32>
    %135 = vector.shape_cast %134 : vector<1x8x1xf32> to vector<8x1xf32>
    %136 = vector.broadcast %1 : f32 to vector<8x1xf32>
    %137 = arith.mulf %135, %136 : vector<8x1xf32>
    %c12_73 = arith.constant 12 : index
    %c0_74 = arith.constant 0 : index
    %c0_75 = arith.constant 0 : index
    %138 = vector.load %arg3[%c12_73, %c0_74, %c0_75] : memref<37x8x1xf32, #tpu.memory_space<vmem>>, vector<1x8x1xf32>
    %139 = vector.shape_cast %138 : vector<1x8x1xf32> to vector<8x1xf32>
    %140 = arith.addf %137, %139 : vector<8x1xf32>
    %141 = vector.broadcast %140 : vector<8x1xf32> to vector<8x384xf32>
    %142 = arith.mulf %141, %133 : vector<8x384xf32>
    %143 = arith.addf %101, %142 : vector<8x384xf32>
    %c13 = arith.constant 13 : index
    %c0_76 = arith.constant 0 : index
    %c0_77 = arith.constant 0 : index
    %144 = vector.load %arg2[%c13, %c0_76, %c0_77] : memref<37x8x1xf32, #tpu.memory_space<vmem>>, vector<1x8x1xf32>
    %145 = vector.shape_cast %144 : vector<1x8x1xf32> to vector<8x1xf32>
    %146 = vector.broadcast %1 : f32 to vector<8x1xf32>
    %147 = arith.mulf %145, %146 : vector<8x1xf32>
    %c13_78 = arith.constant 13 : index
    %c0_79 = arith.constant 0 : index
    %c0_80 = arith.constant 0 : index
    %148 = vector.load %arg3[%c13_78, %c0_79, %c0_80] : memref<37x8x1xf32, #tpu.memory_space<vmem>>, vector<1x8x1xf32>
    %149 = vector.shape_cast %148 : vector<1x8x1xf32> to vector<8x1xf32>
    %150 = arith.addf %147, %149 : vector<8x1xf32>
    %151 = vector.broadcast %150 : vector<8x1xf32> to vector<8x384xf32>
    %152 = arith.mulf %151, %133 : vector<8x384xf32>
    %153 = arith.addf %111, %152 : vector<8x384xf32>
    %c14 = arith.constant 14 : index
    %c0_81 = arith.constant 0 : index
    %c0_82 = arith.constant 0 : index
    %154 = vector.load %arg2[%c14, %c0_81, %c0_82] : memref<37x8x1xf32, #tpu.memory_space<vmem>>, vector<1x8x1xf32>
    %155 = vector.shape_cast %154 : vector<1x8x1xf32> to vector<8x1xf32>
    %156 = vector.broadcast %1 : f32 to vector<8x1xf32>
    %157 = arith.mulf %155, %156 : vector<8x1xf32>
    %c14_83 = arith.constant 14 : index
    %c0_84 = arith.constant 0 : index
    %c0_85 = arith.constant 0 : index
    %158 = vector.load %arg3[%c14_83, %c0_84, %c0_85] : memref<37x8x1xf32, #tpu.memory_space<vmem>>, vector<1x8x1xf32>
    %159 = vector.shape_cast %158 : vector<1x8x1xf32> to vector<8x1xf32>
    %160 = arith.addf %157, %159 : vector<8x1xf32>
    %161 = vector.broadcast %160 : vector<8x1xf32> to vector<8x384xf32>
    %162 = arith.mulf %161, %133 : vector<8x384xf32>
    %163 = arith.addf %121, %162 : vector<8x384xf32>
    %c15 = arith.constant 15 : index
    %c0_86 = arith.constant 0 : index
    %c0_87 = arith.constant 0 : index
    %164 = vector.load %arg2[%c15, %c0_86, %c0_87] : memref<37x8x1xf32, #tpu.memory_space<vmem>>, vector<1x8x1xf32>
    %165 = vector.shape_cast %164 : vector<1x8x1xf32> to vector<8x1xf32>
    %166 = vector.broadcast %1 : f32 to vector<8x1xf32>
    %167 = arith.mulf %165, %166 : vector<8x1xf32>
    %c15_88 = arith.constant 15 : index
    %c0_89 = arith.constant 0 : index
    %c0_90 = arith.constant 0 : index
    %168 = vector.load %arg3[%c15_88, %c0_89, %c0_90] : memref<37x8x1xf32, #tpu.memory_space<vmem>>, vector<1x8x1xf32>
    %169 = vector.shape_cast %168 : vector<1x8x1xf32> to vector<8x1xf32>
    %170 = arith.addf %167, %169 : vector<8x1xf32>
    %171 = vector.broadcast %170 : vector<8x1xf32> to vector<8x384xf32>
    %172 = arith.mulf %171, %133 : vector<8x384xf32>
    %173 = arith.addf %131, %172 : vector<8x384xf32>
    %c0_91 = arith.constant 0 : index
    %c0_92 = arith.constant 0 : index
    %c19 = arith.constant 19 : index
    %174 = vector.load %arg4[%c0_91, %c0_92, %c19] : memref<1x8x512xf32, #tpu.memory_space<vmem>>, vector<1x8x384xf32>
    %175 = vector.shape_cast %174 : vector<1x8x384xf32> to vector<8x384xf32>
    %c16 = arith.constant 16 : index
    %c0_93 = arith.constant 0 : index
    %c0_94 = arith.constant 0 : index
    %176 = vector.load %arg2[%c16, %c0_93, %c0_94] : memref<37x8x1xf32, #tpu.memory_space<vmem>>, vector<1x8x1xf32>
    %177 = vector.shape_cast %176 : vector<1x8x1xf32> to vector<8x1xf32>
    %178 = vector.broadcast %1 : f32 to vector<8x1xf32>
    %179 = arith.mulf %177, %178 : vector<8x1xf32>
    %c16_95 = arith.constant 16 : index
    %c0_96 = arith.constant 0 : index
    %c0_97 = arith.constant 0 : index
    %180 = vector.load %arg3[%c16_95, %c0_96, %c0_97] : memref<37x8x1xf32, #tpu.memory_space<vmem>>, vector<1x8x1xf32>
    %181 = vector.shape_cast %180 : vector<1x8x1xf32> to vector<8x1xf32>
    %182 = arith.addf %179, %181 : vector<8x1xf32>
    %183 = vector.broadcast %182 : vector<8x1xf32> to vector<8x384xf32>
    %184 = arith.mulf %183, %175 : vector<8x384xf32>
    %185 = arith.addf %143, %184 : vector<8x384xf32>
    %c17 = arith.constant 17 : index
    %c0_98 = arith.constant 0 : index
    %c0_99 = arith.constant 0 : index
    %186 = vector.load %arg2[%c17, %c0_98, %c0_99] : memref<37x8x1xf32, #tpu.memory_space<vmem>>, vector<1x8x1xf32>
    %187 = vector.shape_cast %186 : vector<1x8x1xf32> to vector<8x1xf32>
    %188 = vector.broadcast %1 : f32 to vector<8x1xf32>
    %189 = arith.mulf %187, %188 : vector<8x1xf32>
    %c17_100 = arith.constant 17 : index
    %c0_101 = arith.constant 0 : index
    %c0_102 = arith.constant 0 : index
    %190 = vector.load %arg3[%c17_100, %c0_101, %c0_102] : memref<37x8x1xf32, #tpu.memory_space<vmem>>, vector<1x8x1xf32>
    %191 = vector.shape_cast %190 : vector<1x8x1xf32> to vector<8x1xf32>
    %192 = arith.addf %189, %191 : vector<8x1xf32>
    %193 = vector.broadcast %192 : vector<8x1xf32> to vector<8x384xf32>
    %194 = arith.mulf %193, %175 : vector<8x384xf32>
    %195 = arith.addf %153, %194 : vector<8x384xf32>
    %c18 = arith.constant 18 : index
    %c0_103 = arith.constant 0 : index
    %c0_104 = arith.constant 0 : index
    %196 = vector.load %arg2[%c18, %c0_103, %c0_104] : memref<37x8x1xf32, #tpu.memory_space<vmem>>, vector<1x8x1xf32>
    %197 = vector.shape_cast %196 : vector<1x8x1xf32> to vector<8x1xf32>
    %198 = vector.broadcast %1 : f32 to vector<8x1xf32>
    %199 = arith.mulf %197, %198 : vector<8x1xf32>
    %c18_105 = arith.constant 18 : index
    %c0_106 = arith.constant 0 : index
    %c0_107 = arith.constant 0 : index
    %200 = vector.load %arg3[%c18_105, %c0_106, %c0_107] : memref<37x8x1xf32, #tpu.memory_space<vmem>>, vector<1x8x1xf32>
    %201 = vector.shape_cast %200 : vector<1x8x1xf32> to vector<8x1xf32>
    %202 = arith.addf %199, %201 : vector<8x1xf32>
    %203 = vector.broadcast %202 : vector<8x1xf32> to vector<8x384xf32>
    %204 = arith.mulf %203, %175 : vector<8x384xf32>
    %205 = arith.addf %163, %204 : vector<8x384xf32>
    %c19_108 = arith.constant 19 : index
    %c0_109 = arith.constant 0 : index
    %c0_110 = arith.constant 0 : index
    %206 = vector.load %arg2[%c19_108, %c0_109, %c0_110] : memref<37x8x1xf32, #tpu.memory_space<vmem>>, vector<1x8x1xf32>
    %207 = vector.shape_cast %206 : vector<1x8x1xf32> to vector<8x1xf32>
    %208 = vector.broadcast %1 : f32 to vector<8x1xf32>
    %209 = arith.mulf %207, %208 : vector<8x1xf32>
    %c19_111 = arith.constant 19 : index
    %c0_112 = arith.constant 0 : index
    %c0_113 = arith.constant 0 : index
    %210 = vector.load %arg3[%c19_111, %c0_112, %c0_113] : memref<37x8x1xf32, #tpu.memory_space<vmem>>, vector<1x8x1xf32>
    %211 = vector.shape_cast %210 : vector<1x8x1xf32> to vector<8x1xf32>
    %212 = arith.addf %209, %211 : vector<8x1xf32>
    %213 = vector.broadcast %212 : vector<8x1xf32> to vector<8x384xf32>
    %214 = arith.mulf %213, %175 : vector<8x384xf32>
    %215 = arith.addf %173, %214 : vector<8x384xf32>
    %c0_114 = arith.constant 0 : index
    %c0_115 = arith.constant 0 : index
    %c18_116 = arith.constant 18 : index
    %216 = vector.load %arg4[%c0_114, %c0_115, %c18_116] : memref<1x8x512xf32, #tpu.memory_space<vmem>>, vector<1x8x384xf32>
    %217 = vector.shape_cast %216 : vector<1x8x384xf32> to vector<8x384xf32>
    %c20_117 = arith.constant 20 : index
    %c0_118 = arith.constant 0 : index
    %c0_119 = arith.constant 0 : index
    %218 = vector.load %arg2[%c20_117, %c0_118, %c0_119] : memref<37x8x1xf32, #tpu.memory_space<vmem>>, vector<1x8x1xf32>
    %219 = vector.shape_cast %218 : vector<1x8x1xf32> to vector<8x1xf32>
    %220 = vector.broadcast %1 : f32 to vector<8x1xf32>
    %221 = arith.mulf %219, %220 : vector<8x1xf32>
    %c20_120 = arith.constant 20 : index
    %c0_121 = arith.constant 0 : index
    %c0_122 = arith.constant 0 : index
    %222 = vector.load %arg3[%c20_120, %c0_121, %c0_122] : memref<37x8x1xf32, #tpu.memory_space<vmem>>, vector<1x8x1xf32>
    %223 = vector.shape_cast %222 : vector<1x8x1xf32> to vector<8x1xf32>
    %224 = arith.addf %221, %223 : vector<8x1xf32>
    %225 = vector.broadcast %224 : vector<8x1xf32> to vector<8x384xf32>
    %226 = arith.mulf %225, %217 : vector<8x384xf32>
    %227 = arith.addf %185, %226 : vector<8x384xf32>
    %c21 = arith.constant 21 : index
    %c0_123 = arith.constant 0 : index
    %c0_124 = arith.constant 0 : index
    %228 = vector.load %arg2[%c21, %c0_123, %c0_124] : memref<37x8x1xf32, #tpu.memory_space<vmem>>, vector<1x8x1xf32>
    %229 = vector.shape_cast %228 : vector<1x8x1xf32> to vector<8x1xf32>
    %230 = vector.broadcast %1 : f32 to vector<8x1xf32>
    %231 = arith.mulf %229, %230 : vector<8x1xf32>
    %c21_125 = arith.constant 21 : index
    %c0_126 = arith.constant 0 : index
    %c0_127 = arith.constant 0 : index
    %232 = vector.load %arg3[%c21_125, %c0_126, %c0_127] : memref<37x8x1xf32, #tpu.memory_space<vmem>>, vector<1x8x1xf32>
    %233 = vector.shape_cast %232 : vector<1x8x1xf32> to vector<8x1xf32>
    %234 = arith.addf %231, %233 : vector<8x1xf32>
    %235 = vector.broadcast %234 : vector<8x1xf32> to vector<8x384xf32>
    %236 = arith.mulf %235, %217 : vector<8x384xf32>
    %237 = arith.addf %195, %236 : vector<8x384xf32>
    %c22 = arith.constant 22 : index
    %c0_128 = arith.constant 0 : index
    %c0_129 = arith.constant 0 : index
    %238 = vector.load %arg2[%c22, %c0_128, %c0_129] : memref<37x8x1xf32, #tpu.memory_space<vmem>>, vector<1x8x1xf32>
    %239 = vector.shape_cast %238 : vector<1x8x1xf32> to vector<8x1xf32>
    %240 = vector.broadcast %1 : f32 to vector<8x1xf32>
    %241 = arith.mulf %239, %240 : vector<8x1xf32>
    %c22_130 = arith.constant 22 : index
    %c0_131 = arith.constant 0 : index
    %c0_132 = arith.constant 0 : index
    %242 = vector.load %arg3[%c22_130, %c0_131, %c0_132] : memref<37x8x1xf32, #tpu.memory_space<vmem>>, vector<1x8x1xf32>
    %243 = vector.shape_cast %242 : vector<1x8x1xf32> to vector<8x1xf32>
    %244 = arith.addf %241, %243 : vector<8x1xf32>
    %245 = vector.broadcast %244 : vector<8x1xf32> to vector<8x384xf32>
    %246 = arith.mulf %245, %217 : vector<8x384xf32>
    %247 = arith.addf %205, %246 : vector<8x384xf32>
    %c23 = arith.constant 23 : index
    %c0_133 = arith.constant 0 : index
    %c0_134 = arith.constant 0 : index
    %248 = vector.load %arg2[%c23, %c0_133, %c0_134] : memref<37x8x1xf32, #tpu.memory_space<vmem>>, vector<1x8x1xf32>
    %249 = vector.shape_cast %248 : vector<1x8x1xf32> to vector<8x1xf32>
    %250 = vector.broadcast %1 : f32 to vector<8x1xf32>
    %251 = arith.mulf %249, %250 : vector<8x1xf32>
    %c23_135 = arith.constant 23 : index
    %c0_136 = arith.constant 0 : index
    %c0_137 = arith.constant 0 : index
    %252 = vector.load %arg3[%c23_135, %c0_136, %c0_137] : memref<37x8x1xf32, #tpu.memory_space<vmem>>, vector<1x8x1xf32>
    %253 = vector.shape_cast %252 : vector<1x8x1xf32> to vector<8x1xf32>
    %254 = arith.addf %251, %253 : vector<8x1xf32>
    %255 = vector.broadcast %254 : vector<8x1xf32> to vector<8x384xf32>
    %256 = arith.mulf %255, %217 : vector<8x384xf32>
    %257 = arith.addf %215, %256 : vector<8x384xf32>
    %c0_138 = arith.constant 0 : index
    %c0_139 = arith.constant 0 : index
    %c2_140 = arith.constant 2 : index
    %258 = vector.load %arg4[%c0_138, %c0_139, %c2_140] : memref<1x8x512xf32, #tpu.memory_space<vmem>>, vector<1x8x384xf32>
    %259 = vector.shape_cast %258 : vector<1x8x384xf32> to vector<8x384xf32>
    %c24 = arith.constant 24 : index
    %c0_141 = arith.constant 0 : index
    %c0_142 = arith.constant 0 : index
    %260 = vector.load %arg2[%c24, %c0_141, %c0_142] : memref<37x8x1xf32, #tpu.memory_space<vmem>>, vector<1x8x1xf32>
    %261 = vector.shape_cast %260 : vector<1x8x1xf32> to vector<8x1xf32>
    %262 = vector.broadcast %1 : f32 to vector<8x1xf32>
    %263 = arith.mulf %261, %262 : vector<8x1xf32>
    %c24_143 = arith.constant 24 : index
    %c0_144 = arith.constant 0 : index
    %c0_145 = arith.constant 0 : index
    %264 = vector.load %arg3[%c24_143, %c0_144, %c0_145] : memref<37x8x1xf32, #tpu.memory_space<vmem>>, vector<1x8x1xf32>
    %265 = vector.shape_cast %264 : vector<1x8x1xf32> to vector<8x1xf32>
    %266 = arith.addf %263, %265 : vector<8x1xf32>
    %267 = vector.broadcast %266 : vector<8x1xf32> to vector<8x384xf32>
    %268 = arith.mulf %267, %259 : vector<8x384xf32>
    %269 = arith.addf %227, %268 : vector<8x384xf32>
    %c25 = arith.constant 25 : index
    %c0_146 = arith.constant 0 : index
    %c0_147 = arith.constant 0 : index
    %270 = vector.load %arg2[%c25, %c0_146, %c0_147] : memref<37x8x1xf32, #tpu.memory_space<vmem>>, vector<1x8x1xf32>
    %271 = vector.shape_cast %270 : vector<1x8x1xf32> to vector<8x1xf32>
    %272 = vector.broadcast %1 : f32 to vector<8x1xf32>
    %273 = arith.mulf %271, %272 : vector<8x1xf32>
    %c25_148 = arith.constant 25 : index
    %c0_149 = arith.constant 0 : index
    %c0_150 = arith.constant 0 : index
    %274 = vector.load %arg3[%c25_148, %c0_149, %c0_150] : memref<37x8x1xf32, #tpu.memory_space<vmem>>, vector<1x8x1xf32>
    %275 = vector.shape_cast %274 : vector<1x8x1xf32> to vector<8x1xf32>
    %276 = arith.addf %273, %275 : vector<8x1xf32>
    %277 = vector.broadcast %276 : vector<8x1xf32> to vector<8x384xf32>
    %278 = arith.mulf %277, %259 : vector<8x384xf32>
    %279 = arith.addf %237, %278 : vector<8x384xf32>
    %c26 = arith.constant 26 : index
    %c0_151 = arith.constant 0 : index
    %c0_152 = arith.constant 0 : index
    %280 = vector.load %arg2[%c26, %c0_151, %c0_152] : memref<37x8x1xf32, #tpu.memory_space<vmem>>, vector<1x8x1xf32>
    %281 = vector.shape_cast %280 : vector<1x8x1xf32> to vector<8x1xf32>
    %282 = vector.broadcast %1 : f32 to vector<8x1xf32>
    %283 = arith.mulf %281, %282 : vector<8x1xf32>
    %c26_153 = arith.constant 26 : index
    %c0_154 = arith.constant 0 : index
    %c0_155 = arith.constant 0 : index
    %284 = vector.load %arg3[%c26_153, %c0_154, %c0_155] : memref<37x8x1xf32, #tpu.memory_space<vmem>>, vector<1x8x1xf32>
    %285 = vector.shape_cast %284 : vector<1x8x1xf32> to vector<8x1xf32>
    %286 = arith.addf %283, %285 : vector<8x1xf32>
    %287 = vector.broadcast %286 : vector<8x1xf32> to vector<8x384xf32>
    %288 = arith.mulf %287, %259 : vector<8x384xf32>
    %289 = arith.addf %247, %288 : vector<8x384xf32>
    %c27 = arith.constant 27 : index
    %c0_156 = arith.constant 0 : index
    %c0_157 = arith.constant 0 : index
    %290 = vector.load %arg2[%c27, %c0_156, %c0_157] : memref<37x8x1xf32, #tpu.memory_space<vmem>>, vector<1x8x1xf32>
    %291 = vector.shape_cast %290 : vector<1x8x1xf32> to vector<8x1xf32>
    %292 = vector.broadcast %1 : f32 to vector<8x1xf32>
    %293 = arith.mulf %291, %292 : vector<8x1xf32>
    %c27_158 = arith.constant 27 : index
    %c0_159 = arith.constant 0 : index
    %c0_160 = arith.constant 0 : index
    %294 = vector.load %arg3[%c27_158, %c0_159, %c0_160] : memref<37x8x1xf32, #tpu.memory_space<vmem>>, vector<1x8x1xf32>
    %295 = vector.shape_cast %294 : vector<1x8x1xf32> to vector<8x1xf32>
    %296 = arith.addf %293, %295 : vector<8x1xf32>
    %297 = vector.broadcast %296 : vector<8x1xf32> to vector<8x384xf32>
    %298 = arith.mulf %297, %259 : vector<8x384xf32>
    %299 = arith.addf %257, %298 : vector<8x384xf32>
    %c0_161 = arith.constant 0 : index
    %c0_162 = arith.constant 0 : index
    %c1_163 = arith.constant 1 : index
    %300 = vector.load %arg4[%c0_161, %c0_162, %c1_163] : memref<1x8x512xf32, #tpu.memory_space<vmem>>, vector<1x8x384xf32>
    %301 = vector.shape_cast %300 : vector<1x8x384xf32> to vector<8x384xf32>
    %c28 = arith.constant 28 : index
    %c0_164 = arith.constant 0 : index
    %c0_165 = arith.constant 0 : index
    %302 = vector.load %arg2[%c28, %c0_164, %c0_165] : memref<37x8x1xf32, #tpu.memory_space<vmem>>, vector<1x8x1xf32>
    %303 = vector.shape_cast %302 : vector<1x8x1xf32> to vector<8x1xf32>
    %304 = vector.broadcast %1 : f32 to vector<8x1xf32>
    %305 = arith.mulf %303, %304 : vector<8x1xf32>
    %c28_166 = arith.constant 28 : index
    %c0_167 = arith.constant 0 : index
    %c0_168 = arith.constant 0 : index
    %306 = vector.load %arg3[%c28_166, %c0_167, %c0_168] : memref<37x8x1xf32, #tpu.memory_space<vmem>>, vector<1x8x1xf32>
    %307 = vector.shape_cast %306 : vector<1x8x1xf32> to vector<8x1xf32>
    %308 = arith.addf %305, %307 : vector<8x1xf32>
    %309 = vector.broadcast %308 : vector<8x1xf32> to vector<8x384xf32>
    %310 = arith.mulf %309, %301 : vector<8x384xf32>
    %311 = arith.addf %269, %310 : vector<8x384xf32>
    %c29 = arith.constant 29 : index
    %c0_169 = arith.constant 0 : index
    %c0_170 = arith.constant 0 : index
    %312 = vector.load %arg2[%c29, %c0_169, %c0_170] : memref<37x8x1xf32, #tpu.memory_space<vmem>>, vector<1x8x1xf32>
    %313 = vector.shape_cast %312 : vector<1x8x1xf32> to vector<8x1xf32>
    %314 = vector.broadcast %1 : f32 to vector<8x1xf32>
    %315 = arith.mulf %313, %314 : vector<8x1xf32>
    %c29_171 = arith.constant 29 : index
    %c0_172 = arith.constant 0 : index
    %c0_173 = arith.constant 0 : index
    %316 = vector.load %arg3[%c29_171, %c0_172, %c0_173] : memref<37x8x1xf32, #tpu.memory_space<vmem>>, vector<1x8x1xf32>
    %317 = vector.shape_cast %316 : vector<1x8x1xf32> to vector<8x1xf32>
    %318 = arith.addf %315, %317 : vector<8x1xf32>
    %319 = vector.broadcast %318 : vector<8x1xf32> to vector<8x384xf32>
    %320 = arith.mulf %319, %301 : vector<8x384xf32>
    %321 = arith.addf %279, %320 : vector<8x384xf32>
    %c30 = arith.constant 30 : index
    %c0_174 = arith.constant 0 : index
    %c0_175 = arith.constant 0 : index
    %322 = vector.load %arg2[%c30, %c0_174, %c0_175] : memref<37x8x1xf32, #tpu.memory_space<vmem>>, vector<1x8x1xf32>
    %323 = vector.shape_cast %322 : vector<1x8x1xf32> to vector<8x1xf32>
    %324 = vector.broadcast %1 : f32 to vector<8x1xf32>
    %325 = arith.mulf %323, %324 : vector<8x1xf32>
    %c30_176 = arith.constant 30 : index
    %c0_177 = arith.constant 0 : index
    %c0_178 = arith.constant 0 : index
    %326 = vector.load %arg3[%c30_176, %c0_177, %c0_178] : memref<37x8x1xf32, #tpu.memory_space<vmem>>, vector<1x8x1xf32>
    %327 = vector.shape_cast %326 : vector<1x8x1xf32> to vector<8x1xf32>
    %328 = arith.addf %325, %327 : vector<8x1xf32>
    %329 = vector.broadcast %328 : vector<8x1xf32> to vector<8x384xf32>
    %330 = arith.mulf %329, %301 : vector<8x384xf32>
    %331 = arith.addf %289, %330 : vector<8x384xf32>
    %c31 = arith.constant 31 : index
    %c0_179 = arith.constant 0 : index
    %c0_180 = arith.constant 0 : index
    %332 = vector.load %arg2[%c31, %c0_179, %c0_180] : memref<37x8x1xf32, #tpu.memory_space<vmem>>, vector<1x8x1xf32>
    %333 = vector.shape_cast %332 : vector<1x8x1xf32> to vector<8x1xf32>
    %334 = vector.broadcast %1 : f32 to vector<8x1xf32>
    %335 = arith.mulf %333, %334 : vector<8x1xf32>
    %c31_181 = arith.constant 31 : index
    %c0_182 = arith.constant 0 : index
    %c0_183 = arith.constant 0 : index
    %336 = vector.load %arg3[%c31_181, %c0_182, %c0_183] : memref<37x8x1xf32, #tpu.memory_space<vmem>>, vector<1x8x1xf32>
    %337 = vector.shape_cast %336 : vector<1x8x1xf32> to vector<8x1xf32>
    %338 = arith.addf %335, %337 : vector<8x1xf32>
    %339 = vector.broadcast %338 : vector<8x1xf32> to vector<8x384xf32>
    %340 = arith.mulf %339, %301 : vector<8x384xf32>
    %341 = arith.addf %299, %340 : vector<8x384xf32>
    %c0_184 = arith.constant 0 : index
    %c0_185 = arith.constant 0 : index
    %c0_186 = arith.constant 0 : index
    %342 = vector.load %arg4[%c0_184, %c0_185, %c0_186] : memref<1x8x512xf32, #tpu.memory_space<vmem>>, vector<1x8x384xf32>
    %343 = vector.shape_cast %342 : vector<1x8x384xf32> to vector<8x384xf32>
    %c32 = arith.constant 32 : index
    %c0_187 = arith.constant 0 : index
    %c0_188 = arith.constant 0 : index
    %344 = vector.load %arg2[%c32, %c0_187, %c0_188] : memref<37x8x1xf32, #tpu.memory_space<vmem>>, vector<1x8x1xf32>
    %345 = vector.shape_cast %344 : vector<1x8x1xf32> to vector<8x1xf32>
    %346 = vector.broadcast %1 : f32 to vector<8x1xf32>
    %347 = arith.mulf %345, %346 : vector<8x1xf32>
    %c32_189 = arith.constant 32 : index
    %c0_190 = arith.constant 0 : index
    %c0_191 = arith.constant 0 : index
    %348 = vector.load %arg3[%c32_189, %c0_190, %c0_191] : memref<37x8x1xf32, #tpu.memory_space<vmem>>, vector<1x8x1xf32>
    %349 = vector.shape_cast %348 : vector<1x8x1xf32> to vector<8x1xf32>
    %350 = arith.addf %347, %349 : vector<8x1xf32>
    %351 = vector.broadcast %350 : vector<8x1xf32> to vector<8x384xf32>
    %352 = arith.mulf %351, %343 : vector<8x384xf32>
    %353 = arith.addf %311, %352 : vector<8x384xf32>
    %c33 = arith.constant 33 : index
    %c0_192 = arith.constant 0 : index
    %c0_193 = arith.constant 0 : index
    %354 = vector.load %arg2[%c33, %c0_192, %c0_193] : memref<37x8x1xf32, #tpu.memory_space<vmem>>, vector<1x8x1xf32>
    %355 = vector.shape_cast %354 : vector<1x8x1xf32> to vector<8x1xf32>
    %356 = vector.broadcast %1 : f32 to vector<8x1xf32>
    %357 = arith.mulf %355, %356 : vector<8x1xf32>
    %c33_194 = arith.constant 33 : index
    %c0_195 = arith.constant 0 : index
    %c0_196 = arith.constant 0 : index
    %358 = vector.load %arg3[%c33_194, %c0_195, %c0_196] : memref<37x8x1xf32, #tpu.memory_space<vmem>>, vector<1x8x1xf32>
    %359 = vector.shape_cast %358 : vector<1x8x1xf32> to vector<8x1xf32>
    %360 = arith.addf %357, %359 : vector<8x1xf32>
    %361 = vector.broadcast %360 : vector<8x1xf32> to vector<8x384xf32>
    %362 = arith.mulf %361, %343 : vector<8x384xf32>
    %363 = arith.addf %321, %362 : vector<8x384xf32>
    %c34 = arith.constant 34 : index
    %c0_197 = arith.constant 0 : index
    %c0_198 = arith.constant 0 : index
    %364 = vector.load %arg2[%c34, %c0_197, %c0_198] : memref<37x8x1xf32, #tpu.memory_space<vmem>>, vector<1x8x1xf32>
    %365 = vector.shape_cast %364 : vector<1x8x1xf32> to vector<8x1xf32>
    %366 = vector.broadcast %1 : f32 to vector<8x1xf32>
    %367 = arith.mulf %365, %366 : vector<8x1xf32>
    %c34_199 = arith.constant 34 : index
    %c0_200 = arith.constant 0 : index
    %c0_201 = arith.constant 0 : index
    %368 = vector.load %arg3[%c34_199, %c0_200, %c0_201] : memref<37x8x1xf32, #tpu.memory_space<vmem>>, vector<1x8x1xf32>
    %369 = vector.shape_cast %368 : vector<1x8x1xf32> to vector<8x1xf32>
    %370 = arith.addf %367, %369 : vector<8x1xf32>
    %371 = vector.broadcast %370 : vector<8x1xf32> to vector<8x384xf32>
    %372 = arith.mulf %371, %343 : vector<8x384xf32>
    %373 = arith.addf %331, %372 : vector<8x384xf32>
    %c35 = arith.constant 35 : index
    %c0_202 = arith.constant 0 : index
    %c0_203 = arith.constant 0 : index
    %374 = vector.load %arg2[%c35, %c0_202, %c0_203] : memref<37x8x1xf32, #tpu.memory_space<vmem>>, vector<1x8x1xf32>
    %375 = vector.shape_cast %374 : vector<1x8x1xf32> to vector<8x1xf32>
    %376 = vector.broadcast %1 : f32 to vector<8x1xf32>
    %377 = arith.mulf %375, %376 : vector<8x1xf32>
    %c35_204 = arith.constant 35 : index
    %c0_205 = arith.constant 0 : index
    %c0_206 = arith.constant 0 : index
    %378 = vector.load %arg3[%c35_204, %c0_205, %c0_206] : memref<37x8x1xf32, #tpu.memory_space<vmem>>, vector<1x8x1xf32>
    %379 = vector.shape_cast %378 : vector<1x8x1xf32> to vector<8x1xf32>
    %380 = arith.addf %377, %379 : vector<8x1xf32>
    %381 = vector.broadcast %380 : vector<8x1xf32> to vector<8x384xf32>
    %382 = arith.mulf %381, %343 : vector<8x384xf32>
    %383 = arith.addf %341, %382 : vector<8x384xf32>
    %c0_207 = arith.constant 0 : index
    %c0_208 = arith.constant 0 : index
    %384 = vector.load %arg6[%c0_207, %c0_208] : memref<8x384xf32, #tpu.memory_space<vmem>>, vector<8x384xf32>
    tpu.vector_store %arg6[%c0_207, %c0_208], %353 {strides = array<i32>} : memref<8x384xf32, #tpu.memory_space<vmem>>, vector<8x384xf32>,
    %c0_209 = arith.constant 0 : index
    %c0_210 = arith.constant 0 : index
    %385 = vector.load %arg6[%c0_209, %c0_210] : memref<8x384xf32, #tpu.memory_space<vmem>>, vector<2x384xf32>
    %c2_211 = arith.constant 2 : index
    %c0_212 = arith.constant 0 : index
    %386 = vector.load %arg6[%c2_211, %c0_212] : memref<8x384xf32, #tpu.memory_space<vmem>>, vector<2x384xf32>
    %387 = arith.addf %385, %386 : vector<2x384xf32>
    %c4_213 = arith.constant 4 : index
    %c0_214 = arith.constant 0 : index
    %388 = vector.load %arg6[%c4_213, %c0_214] : memref<8x384xf32, #tpu.memory_space<vmem>>, vector<2x384xf32>
    %389 = arith.addf %387, %388 : vector<2x384xf32>
    %c6_215 = arith.constant 6 : index
    %c0_216 = arith.constant 0 : index
    %390 = vector.load %arg6[%c6_215, %c0_216] : memref<8x384xf32, #tpu.memory_space<vmem>>, vector<2x384xf32>
    %391 = arith.addf %389, %390 : vector<2x384xf32>
    %c0_217 = arith.constant 0 : index
    %c0_218 = arith.constant 0 : index
    %392 = vector.load %arg6[%c0_217, %c0_218] : memref<8x384xf32, #tpu.memory_space<vmem>>, vector<8x384xf32>
    tpu.vector_store %arg6[%c0_217, %c0_218], %363 {strides = array<i32>} : memref<8x384xf32, #tpu.memory_space<vmem>>, vector<8x384xf32>,
    %c0_219 = arith.constant 0 : index
    %c0_220 = arith.constant 0 : index
    %393 = vector.load %arg6[%c0_219, %c0_220] : memref<8x384xf32, #tpu.memory_space<vmem>>, vector<2x384xf32>
    %c2_221 = arith.constant 2 : index
    %c0_222 = arith.constant 0 : index
    %394 = vector.load %arg6[%c2_221, %c0_222] : memref<8x384xf32, #tpu.memory_space<vmem>>, vector<2x384xf32>
    %395 = arith.addf %393, %394 : vector<2x384xf32>
    %c4_223 = arith.constant 4 : index
    %c0_224 = arith.constant 0 : index
    %396 = vector.load %arg6[%c4_223, %c0_224] : memref<8x384xf32, #tpu.memory_space<vmem>>, vector<2x384xf32>
    %397 = arith.addf %395, %396 : vector<2x384xf32>
    %c6_225 = arith.constant 6 : index
    %c0_226 = arith.constant 0 : index
    %398 = vector.load %arg6[%c6_225, %c0_226] : memref<8x384xf32, #tpu.memory_space<vmem>>, vector<2x384xf32>
    %399 = arith.addf %397, %398 : vector<2x384xf32>
    %c0_227 = arith.constant 0 : index
    %c0_228 = arith.constant 0 : index
    %400 = vector.load %arg6[%c0_227, %c0_228] : memref<8x384xf32, #tpu.memory_space<vmem>>, vector<8x384xf32>
    tpu.vector_store %arg6[%c0_227, %c0_228], %373 {strides = array<i32>} : memref<8x384xf32, #tpu.memory_space<vmem>>, vector<8x384xf32>,
    %c0_229 = arith.constant 0 : index
    %c0_230 = arith.constant 0 : index
    %401 = vector.load %arg6[%c0_229, %c0_230] : memref<8x384xf32, #tpu.memory_space<vmem>>, vector<2x384xf32>
    %c2_231 = arith.constant 2 : index
    %c0_232 = arith.constant 0 : index
    %402 = vector.load %arg6[%c2_231, %c0_232] : memref<8x384xf32, #tpu.memory_space<vmem>>, vector<2x384xf32>
    %403 = arith.addf %401, %402 : vector<2x384xf32>
    %c4_233 = arith.constant 4 : index
    %c0_234 = arith.constant 0 : index
    %404 = vector.load %arg6[%c4_233, %c0_234] : memref<8x384xf32, #tpu.memory_space<vmem>>, vector<2x384xf32>
    %405 = arith.addf %403, %404 : vector<2x384xf32>
    %c6_235 = arith.constant 6 : index
    %c0_236 = arith.constant 0 : index
    %406 = vector.load %arg6[%c6_235, %c0_236] : memref<8x384xf32, #tpu.memory_space<vmem>>, vector<2x384xf32>
    %407 = arith.addf %405, %406 : vector<2x384xf32>
    %c0_237 = arith.constant 0 : index
    %c0_238 = arith.constant 0 : index
    %408 = vector.load %arg6[%c0_237, %c0_238] : memref<8x384xf32, #tpu.memory_space<vmem>>, vector<8x384xf32>
    tpu.vector_store %arg6[%c0_237, %c0_238], %383 {strides = array<i32>} : memref<8x384xf32, #tpu.memory_space<vmem>>, vector<8x384xf32>,
    %c0_239 = arith.constant 0 : index
    %c0_240 = arith.constant 0 : index
    %409 = vector.load %arg6[%c0_239, %c0_240] : memref<8x384xf32, #tpu.memory_space<vmem>>, vector<2x384xf32>
    %c2_241 = arith.constant 2 : index
    %c0_242 = arith.constant 0 : index
    %410 = vector.load %arg6[%c2_241, %c0_242] : memref<8x384xf32, #tpu.memory_space<vmem>>, vector<2x384xf32>
    %411 = arith.addf %409, %410 : vector<2x384xf32>
    %c4_243 = arith.constant 4 : index
    %c0_244 = arith.constant 0 : index
    %412 = vector.load %arg6[%c4_243, %c0_244] : memref<8x384xf32, #tpu.memory_space<vmem>>, vector<2x384xf32>
    %413 = arith.addf %411, %412 : vector<2x384xf32>
    %c6_245 = arith.constant 6 : index
    %c0_246 = arith.constant 0 : index
    %414 = vector.load %arg6[%c6_245, %c0_246] : memref<8x384xf32, #tpu.memory_space<vmem>>, vector<2x384xf32>
    %415 = arith.addf %413, %414 : vector<2x384xf32>
    %416 = tpu.concatenate %391, %399, %407, %415 in 0 : vector<2x384xf32>, vector<2x384xf32>, vector<2x384xf32>, vector<2x384xf32> -> vector<8x384xf32>
    %c36_247 = arith.constant 36 : index
    %c0_248 = arith.constant 0 : index
    %c0_249 = arith.constant 0 : index
    %417 = vector.load %arg2[%c36_247, %c0_248, %c0_249] : memref<37x8x1xf32, #tpu.memory_space<vmem>>, vector<1x8x1xf32>
    %418 = vector.shape_cast %417 : vector<1x8x1xf32> to vector<8x1xf32>
    %419 = vector.broadcast %1 : f32 to vector<8x1xf32>
    %420 = arith.mulf %418, %419 : vector<8x1xf32>
    %c36_250 = arith.constant 36 : index
    %c0_251 = arith.constant 0 : index
    %c0_252 = arith.constant 0 : index
    %421 = vector.load %arg3[%c36_250, %c0_251, %c0_252] : memref<37x8x1xf32, #tpu.memory_space<vmem>>, vector<1x8x1xf32>
    %422 = vector.shape_cast %421 : vector<1x8x1xf32> to vector<8x1xf32>
    %423 = arith.addf %420, %422 : vector<8x1xf32>
    %424 = vector.broadcast %423 : vector<8x1xf32> to vector<8x384xf32>
    %425 = arith.addf %416, %424 : vector<8x384xf32>
    %c0_253 = arith.constant 0 : index
    %c0_254 = arith.constant 0 : index
    %c0_255 = arith.constant 0 : index
    %426 = vector.load %arg5[%c0_253, %c0_254, %c0_255] : memref<1x8x384xf32, #tpu.memory_space<vmem>>, vector<1x8x384xf32>
    %427 = vector.shape_cast %426 : vector<1x8x384xf32> to vector<8x384xf32>
    %428 = vector.shape_cast %425 : vector<8x384xf32> to vector<1x8x384xf32>
    tpu.vector_store %arg5[%c0_253, %c0_254, %c0_255], %428 {strides = array<i32>} : memref<1x8x384xf32, #tpu.memory_space<vmem>>, vector<1x8x384xf32>,
    return
  }
  func.func @transform_0(%arg0: i32) -> i32 {
    %c0_i32 = arith.constant 0 : i32
    %c0_i32_0 = arith.constant 0 : i32
    return %c0_i32 : i32
  }
  func.func @transform_1(%arg0: i32) -> (i32, i32, i32) {
    %c0_i32 = arith.constant 0 : i32
    %c0_i32_0 = arith.constant 0 : i32
    %c0_i32_1 = arith.constant 0 : i32
    %c0_i32_2 = arith.constant 0 : i32
    return %c0_i32, %c0_i32_0, %c0_i32_1 : i32, i32, i32
  }
  func.func @transform_2(%arg0: i32) -> (i32, i32, i32) {
    %c0_i32 = arith.constant 0 : i32
    %c0_i32_0 = arith.constant 0 : i32
    %c0_i32_1 = arith.constant 0 : i32
    %c0_i32_2 = arith.constant 0 : i32
    return %c0_i32, %c0_i32_0, %c0_i32_1 : i32, i32, i32
  }
  func.func @transform_3(%arg0: i32) -> (i32, i32, i32) {
    %c0_i32 = arith.constant 0 : i32
    %c0_i32_0 = arith.constant 0 : i32
    %c0_i32_1 = arith.constant 0 : i32
    return %arg0, %c0_i32, %c0_i32_0 : i32, i32, i32
  }
  func.func @transform_4(%arg0: i32) -> (i32, i32, i32) {
    %c0_i32 = arith.constant 0 : i32
    %c0_i32_0 = arith.constant 0 : i32
    %c0_i32_1 = arith.constant 0 : i32
    return %arg0, %c0_i32, %c0_i32_0 : i32, i32, i32
  }
}

</mosaic_0001>

<llo_original>
// kernel: tpu_custom_call.1
$region0: #{tpu_custom_call.1}
  #allocation0 [shape = 'u32[]', space=smem, size = 0x4, offset = 0x4, fixed_abs, tag = 'smem constant byte address 0x4 - core index']
  #allocation1 [shape = 'u32[72,128]{1,0:T(1,128)}', space=vmem, size = 0x9000, scoped, tag = 'internal scratch']
  #allocation2 [shape = 'f32[8,384]{1,0:T(8,128)}', space=vmem, size = 0x3000, scoped, tag = 'scratch operand']
  %s0 = inlined_call_operand.vmem [shape: f32[2], index: 0, kind: input, shape index: {}]
  %s1 = inlined_call_operand.vmem [shape: f32[37,8,1], index: 1, kind: input, shape index: {}]
  %s2 = inlined_call_operand.vmem [shape: f32[37,8,1], index: 2, kind: input, shape index: {}]
  %s3 = inlined_call_operand.vmem [shape: f32[2,8,512], index: 3, kind: input, shape index: {}]
  %s4 = inlined_call_operand.hbm [shape: f32[2,8,384], index: 4, kind: output, shape index: {}]
  %s5 = sld [smem:[#allocation0]]
  $region53: #{tpu_custom_call.1} parent=0
    _
  %s7 = ssub.s32 1, %s5
  %s8 = scalar_select 0, %s7, %s5
  $region1: #{tpu_custom_call.1} parent=0
    #allocation3 [shape = 'u8[512]{0}', space=smem, size = 0x200, scoped, tag = 'input window, operand 0, single buffered']
    #allocation4 [shape = 's32[2]{0}', space=sflag, size = 0x8, scoped, tag = 'scoped memory for tpu_custom_call.1']
    #allocation5 [shape = 's32[2]{0}', space=sflag, size = 0x8, scoped, tag = 'scoped memory for tpu_custom_call.1']
    #allocation6 [shape = 'u8[24576]{0}', space=vmem, size = 0x6000, scoped, tag = 'output window, operand 0']
    %9 = vsyncpa [#allocation5], 0
    %10 = vsyncpa [#allocation4], 0
    %s11 = scalar_lea.sflag [#allocation4], 1
    %12 = vsyncpa %s11, 0
    loop: start=0, step=1, limit=4
    $region2: #{tpu_custom_call.1} parent=1 // loop_pre_header
      _
    $region3: #{tpu_custom_call.1} parent=1 // loop_header
      %s14 = sphi 0, %s18
      %p15 = scmp.ge.s32.totalorder %s14, 4
      %s22 = sphi 0, %s22
      %s24 = sphi 0, %s22
      %s25 = sphi 0, %s24
      %s39 = sphi 0, %s25
      %s43 = sphi 0, %s43
      %s45 = sphi 0, %s43
      %s46 = sphi 0, %s45
      %s60 = sphi 0, %s46
      %s64 = sphi 0, %s64
      %s66 = sphi 0, %s64
      %s67 = sphi 0, %s66
      %s81 = sphi 0, %s67
      %s87 = sphi 0, %s89
      %s90 = sphi 0, %s87
      %s91 = sphi 0, %s90
      %s107 = sphi 0, %s91
      %s113 = sphi 0, %s115
      %s116 = sphi 0, %s113
      %s117 = sphi 0, %s116
      %s133 = sphi 0, %s117
    $region4: #{tpu_custom_call.1} parent=1 // loop_header_branch
      %17 = sbr.rel (%p15) target = $region8
    $region5: #{tpu_custom_call.1} parent=1 // loop_body
      %s19 = ssub.s32 %s14, 1
      %s20 = ssub.s32 %s14, 2
      %s21 = sadd.s32 %s14, 1
      %s23 = sadd.s32 %s22, 1
      %p26 = scmp.eq.s32.totalorder %s14, 1
      %p27 = scmp.ne.s32.totalorder %s22, %s24
      %p28 = scmp.eq.s32.totalorder %s14, 0
      %p29 = por %p27, %p28
      %p30 = scmp.ne.s32.totalorder %s22, %s24
      %p31 = scmp.eq.s32.totalorder %s19, 1
      %p32 = por %p30, %p31
      %p33 = scmp.ne.s32.totalorder %s24, %s25
      %p34 = scmp.eq.s32.totalorder %s19, 0
      %p35 = por %p33, %p34
      %p36 = scmp.ne.s32.totalorder %s24, %s25
      %p37 = scmp.eq.s32.totalorder %s20, 1
      %p38 = por %p36, %p37
      %p40 = scmp.ne.s32.totalorder %s25, %s39
      %p41 = scmp.eq.s32.totalorder %s20, 0
      %p42 = por %p40, %p41
      %s44 = sadd.s32 %s43, 1
      %p47 = scmp.eq.s32.totalorder %s14, 1
      %p48 = scmp.ne.s32.totalorder %s43, %s45
      %p49 = scmp.eq.s32.totalorder %s14, 0
      %p50 = por %p48, %p49
      %p51 = scmp.ne.s32.totalorder %s43, %s45
      %p52 = scmp.eq.s32.totalorder %s19, 1
      %p53 = por %p51, %p52
      %p54 = scmp.ne.s32.totalorder %s45, %s46
      %p55 = scmp.eq.s32.totalorder %s19, 0
      %p56 = por %p54, %p55
      %p57 = scmp.ne.s32.totalorder %s45, %s46
      %p58 = scmp.eq.s32.totalorder %s20, 1
      %p59 = por %p57, %p58
      %p61 = scmp.ne.s32.totalorder %s46, %s60
      %p62 = scmp.eq.s32.totalorder %s20, 0
      %p63 = por %p61, %p62
      %s65 = sadd.s32 %s64, 1
      %p68 = scmp.eq.s32.totalorder %s14, 1
      %p69 = scmp.ne.s32.totalorder %s64, %s66
      %p70 = scmp.eq.s32.totalorder %s14, 0
      %p71 = por %p69, %p70
      %p72 = scmp.ne.s32.totalorder %s64, %s66
      %p73 = scmp.eq.s32.totalorder %s19, 1
      %p74 = por %p72, %p73
      %p75 = scmp.ne.s32.totalorder %s66, %s67
      %p76 = scmp.eq.s32.totalorder %s19, 0
      %p77 = por %p75, %p76
      %p78 = scmp.ne.s32.totalorder %s66, %s67
      %p79 = scmp.eq.s32.totalorder %s20, 1
      %p80 = por %p78, %p79
      %p82 = scmp.ne.s32.totalorder %s67, %s81
      %p83 = scmp.eq.s32.totalorder %s20, 0
      %p84 = por %p82, %p83
      %s85 = ssub.s32 %s14, %s21
      %p86 = scmp.eq.s32.totalorder %s85, 0
      %s88 = sadd.s32 %s87, 1
      %s89 = scalar_select %p86, %s87, %s88
      %p92 = pneg %p86
      %p93 = scmp.eq.s32.totalorder %s14, 1
      %p94 = por %p92, %p93
      %p95 = scmp.ne.s32.totalorder %s87, %s90
      %p96 = scmp.eq.s32.totalorder %s14, 0
      %p97 = por %p95, %p96
      %p98 = scmp.ne.s32.totalorder %s87, %s90
      %p99 = scmp.eq.s32.totalorder %s19, 1
      %p100 = por %p98, %p99
      %p101 = scmp.ne.s32.totalorder %s90, %s91
      %p102 = scmp.eq.s32.totalorder %s19, 0
      %p103 = por %p101, %p102
      %p104 = scmp.ne.s32.totalorder %s90, %s91
      %p105 = scmp.eq.s32.totalorder %s20, 1
      %p106 = por %p104, %p105
      %p108 = scmp.ne.s32.totalorder %s91, %s107
      %p109 = scmp.eq.s32.totalorder %s20, 0
      %p110 = por %p108, %p109
      %s111 = ssub.s32 %s14, %s21
      %p112 = scmp.eq.s32.totalorder %s111, 0
      %s114 = sadd.s32 %s113, 1
      %s115 = scalar_select %p112, %s113, %s114
      %p118 = pneg %p112
      %p119 = scmp.eq.s32.totalorder %s14, 1
      %p120 = por %p118, %p119
      %p121 = scmp.ne.s32.totalorder %s113, %s116
      %p122 = scmp.eq.s32.totalorder %s14, 0
      %p123 = por %p121, %p122
      %p124 = scmp.ne.s32.totalorder %s113, %s116
      %p125 = scmp.eq.s32.totalorder %s19, 1
      %p126 = por %p124, %p125
      %p127 = scmp.ne.s32.totalorder %s116, %s117
      %p128 = scmp.eq.s32.totalorder %s19, 0
      %p129 = por %p127, %p128
      %p130 = scmp.ne.s32.totalorder %s116, %s117
      %p131 = scmp.eq.s32.totalorder %s20, 1
      %p132 = por %p130, %p131
      %p134 = scmp.ne.s32.totalorder %s117, %s133
      %p135 = scmp.eq.s32.totalorder %s20, 0
      %p136 = por %p134, %p135
      %p137 = scmp.le.s32.totalorder 1, %s14
      %p138 = scmp.lt.s32.totalorder %s14, 3
      %p139 = pnand %p137, %p138
      %p140 = pneg %p139
      // Predicated region
      $region9: #{tpu_custom_call.1} parent=5 // pred_check
        _
      $region10: #{tpu_custom_call.1} parent=5 // pred_check_branch
        %142 = sbr.rel (%p139) target = $region12
      $region11: #{tpu_custom_call.1} parent=5 // pred_region
        %s143 = ssub.s32 %s14, 1
        // Predicated region
        $region13: #{tpu_custom_call.1} parent=11 // pred_check
          %p144 = pneg %p35
        $region14: #{tpu_custom_call.1} parent=11 // pred_check_branch
          %146 = sbr.rel (%p144) target = $region16
        $region15: #{tpu_custom_call.1} parent=11 // pred_region
          %148 = vsyncadd [#allocation5], 0
          %s150 = sshll.u32 %s0, 4
          %s151 = int_to_ptr.vmem [resolvable:$true] %s150
          %153 = dma.vmem_to_smem %s151, 16, [#allocation3], [#allocation5]
        $region16: #{tpu_custom_call.1} parent=11 // pred_fallthru
          _
        // Predicated region
        $region17: #{tpu_custom_call.1} parent=11 // pred_check
          %p154 = pneg %p56
        $region18: #{tpu_custom_call.1} parent=11 // pred_check_branch
          %156 = sbr.rel (%p154) target = $region20
        $region19: #{tpu_custom_call.1} parent=11 // pred_region
          _
        $region20: #{tpu_custom_call.1} parent=11 // pred_fallthru
          _
        // Predicated region
        $region21: #{tpu_custom_call.1} parent=11 // pred_check
          %p157 = pneg %p77
        $region22: #{tpu_custom_call.1} parent=11 // pred_check_branch
          %159 = sbr.rel (%p157) target = $region24
        $region23: #{tpu_custom_call.1} parent=11 // pred_region
          _
        $region24: #{tpu_custom_call.1} parent=11 // pred_fallthru
          _
      $region12: #{tpu_custom_call.1} parent=5 // pred_fallthru
        _
      %p160 = scmp.lt.s32.totalorder %s14, 2
      // Predicated region
      $region25: #{tpu_custom_call.1} parent=5 // pred_check
        %p161 = pneg %p160
      $region26: #{tpu_custom_call.1} parent=5 // pred_check_branch
        %163 = sbr.rel (%p161) target = $region28
      $region27: #{tpu_custom_call.1} parent=5 // pred_region
        // Predicated region
        $region29: #{tpu_custom_call.1} parent=27 // pred_check
          %p164 = pneg %p97
        $region30: #{tpu_custom_call.1} parent=27 // pred_check_branch
          %166 = sbr.rel (%p164) target = $region32
        $region31: #{tpu_custom_call.1} parent=27 // pred_region
          %p167 = scmp.lt.s32.totalorder %s14, 1
          %s168 = scalar_select %p167, %s14, 1
          %s169 = smul.addr %s168, 4
          %s170 = smul.addr %s169, 8
          %s171 = scalar_lea.vmem %s3, %s170
        $region32: #{tpu_custom_call.1} parent=27 // pred_fallthru
          _
      $region28: #{tpu_custom_call.1} parent=5 // pred_fallthru
        _
      %p172 = scmp.le.s32.totalorder 1, %s14
      %p173 = scmp.lt.s32.totalorder %s14, 3
      %p174 = pnand %p172, %p173
      %p175 = pneg %p174
      // Predicated region
      $region33: #{tpu_custom_call.1} parent=5 // pred_check
        _
      $region34: #{tpu_custom_call.1} parent=5 // pred_check_branch
        %177 = sbr.rel (%p174) target = $region36
      $region35: #{tpu_custom_call.1} parent=5 // pred_region
        %s178 = ssub.s32 %s14, 1
        // Predicated region
        $region37: #{tpu_custom_call.1} parent=35 // pred_check
          %p179 = pneg %p35
        $region38: #{tpu_custom_call.1} parent=35 // pred_check_branch
          %181 = sbr.rel (%p179) target = $region40
        $region39: #{tpu_custom_call.1} parent=35 // pred_region
          %183 = dma.done [#allocation5], 16
        $region40: #{tpu_custom_call.1} parent=35 // pred_fallthru
          _
        %184 = sfence
        %p185 = pneg %p35
        %p186 = pneg %p32
        %p187 = pneg %p56
        %p188 = pneg %p53
        %p189 = pneg %p77
        %p190 = pneg %p74
        %p191 = scmp.lt.s32.totalorder %s19, 1
        %s192 = scalar_select %p191, %s19, 1
        %s193 = smul.addr %s192, 4
        %s194 = smul.addr %s193, 8
        %s195 = scalar_lea.vmem %s3, %s194
        %p196 = pneg %p103
        %p197 = pneg %p100
        %p198 = pneg %p129
        %p199 = pneg %p126
        %s200 = sand.u32 %s116, 1
        %s201 = scalar_lea.sflag [#allocation4], %s200
        %s202 = sand.u32 %s116, 1
        %s203 = smul.addr %s202, 24
        %s204 = scalar_lea.vmem [#allocation6], %s203
        %p205 = scmp.lt.s32.totalorder %s19, 1
        %s206 = scalar_select %p205, %s19, 1
        %s207 = smul.addr %s206, 4
        %s208 = smul.addr %s207, 8
        %s209 = scalar_lea.vmem %s3, %s208
        %s210 = sld [smem:[#allocation3 + %s19]]
        %v211 = vld [vmem:[%s209] sm:$0xff]
        %v212 = vld [vmem:[%s209 + $0x8] sm:$0xff]
        %v213 = vld [vmem:[%s209 + $0x10] sm:$0xff]
        %v214 = vld [vmem:[%s209 + $0x18] sm:$0xff]
        %v215 = vld [vmem:[%s1] sm:$0xff]
        %v216 = vstv %s210
        %v217 = vmul.f32 %v215, %v216
        %v218 = vld [vmem:[%s2] sm:$0xff]
        %v219 = vadd.f32 %v217, %v218
        %221 = vset.pattern.permute.xlu0 0
        %222 = vperm.xlu0 %221, %v219
        %v223 = vpop.permute.xlu0 %222
        %v225 = vmul.f32 %v223, %v211
        %v226 = vmul.f32 %v223, %v212
        %v227 = vmul.f32 %v223, %v213
        %v228 = vmul.f32 %v223, %v214
        %v229 = vadd.f32 %v225, 0.0
        %v230 = vadd.f32 %v226, 0.0
        %v231 = vadd.f32 %v227, 0.0
        %v232 = vadd.f32 %v228, 0.0
        %s233 = scalar_lea.vmem %s1, 8
        %v234 = vld [vmem:[%s233] sm:$0xff]
        %v235 = vmul.f32 %v234, %v216
        %s236 = scalar_lea.vmem %s2, 8
        %v237 = vld [vmem:[%s236] sm:$0xff]
        %v238 = vadd.f32 %v235, %v237
        %240 = vset.pattern.permute.xlu0 0
        %241 = vperm.xlu0 %240, %v238
        %v242 = vpop.permute.xlu0 %241
        %v244 = vmul.f32 %v242, %v211
        %v245 = vmul.f32 %v242, %v212
        %v246 = vmul.f32 %v242, %v213
        %v247 = vmul.f32 %v242, %v214
        %v248 = vadd.f32 %v244, 0.0
        %v249 = vadd.f32 %v245, 0.0
        %v250 = vadd.f32 %v246, 0.0
        %v251 = vadd.f32 %v247, 0.0
        %s252 = scalar_lea.vmem %s1, 16
        %v253 = vld [vmem:[%s252] sm:$0xff]
        %v254 = vmul.f32 %v253, %v216
        %s255 = scalar_lea.vmem %s2, 16
        %v256 = vld [vmem:[%s255] sm:$0xff]
        %v257 = vadd.f32 %v254, %v256
        %259 = vset.pattern.permute.xlu0 0
        %260 = vperm.xlu0 %259, %v257
        %v261 = vpop.permute.xlu0 %260
        %v263 = vmul.f32 %v261, %v211
        %v264 = vmul.f32 %v261, %v212
        %v265 = vmul.f32 %v261, %v213
        %v266 = vmul.f32 %v261, %v214
        %v267 = vadd.f32 %v263, 0.0
        %v268 = vadd.f32 %v264, 0.0
        %v269 = vadd.f32 %v265, 0.0
        %v270 = vadd.f32 %v266, 0.0
        %s271 = scalar_lea.vmem %s1, 24
        %v272 = vld [vmem:[%s271] sm:$0xff]
        %v273 = vmul.f32 %v272, %v216
        %s274 = scalar_lea.vmem %s2, 24
        %v275 = vld [vmem:[%s274] sm:$0xff]
        %v276 = vadd.f32 %v273, %v275
        %278 = vset.pattern.permute.xlu0 0
        %279 = vperm.xlu0 %278, %v276
        %v280 = vpop.permute.xlu0 %279
        %v282 = vmul.f32 %v280, %v211
        %v283 = vmul.f32 %v280, %v212
        %v284 = vmul.f32 %v280, %v213
        %v285 = vmul.f32 %v280, %v214
        %v286 = vadd.f32 %v282, 0.0
        %v287 = vadd.f32 %v283, 0.0
        %v288 = vadd.f32 %v284, 0.0
        %v289 = vadd.f32 %v285, 0.0
        %s290 = scalar_lea.vmem %s1, 32
        %v291 = vld [vmem:[%s290] sm:$0xff]
        %v292 = vmul.f32 %v291, %v216
        %s293 = scalar_lea.vmem %s2, 32
        %v294 = vld [vmem:[%s293] sm:$0xff]
        %v295 = vadd.f32 %v292, %v294
        %297 = vset.pattern.permute.xlu0 0
        %298 = vperm.xlu0 %297, %v295
        %v299 = vpop.permute.xlu0 %298
        %v301 = vmul.f32 %v299, %v211
        %v302 = vmul.f32 %v299, %v212
        %v303 = vmul.f32 %v299, %v213
        %v304 = vmul.f32 %v299, %v214
        %309 = vrot.lane.b32.xlu0 %v301, 1
        %v310 = vpop.permute.xlu0 %309
        %311 = vrot.lane.b32.xlu0 %v302, 1
        %v312 = vpop.permute.xlu0 %311
        %313 = vrot.lane.b32.xlu0 %v303, 1
        %v314 = vpop.permute.xlu0 %313
        %315 = vrot.lane.b32.xlu0 %v304, 1
        %v316 = vpop.permute.xlu0 %315
        %vm317 = vcmask 7168
        %v318 = vsel %vm317, %v310, %v312
        %v319 = vsel %vm317, %v312, %v314
        %v320 = vsel %vm317, %v314, %v316
        %v325 = vadd.f32 %v229, %v310
        %v326 = vadd.f32 %v230, %v318
        %v327 = vadd.f32 %v231, %v319
        %v328 = vadd.f32 %v232, %v320
        %s329 = scalar_lea.vmem %s1, 40
        %v330 = vld [vmem:[%s329] sm:$0xff]
        %v331 = vmul.f32 %v330, %v216
        %s332 = scalar_lea.vmem %s2, 40
        %v333 = vld [vmem:[%s332] sm:$0xff]
        %v334 = vadd.f32 %v331, %v333
        %336 = vset.pattern.permute.xlu0 0
        %337 = vperm.xlu0 %336, %v334
        %v338 = vpop.permute.xlu0 %337
        %v340 = vmul.f32 %v338, %v211
        %v341 = vmul.f32 %v338, %v212
        %v342 = vmul.f32 %v338, %v213
        %v343 = vmul.f32 %v338, %v214
        %348 = vrot.lane.b32.xlu0 %v340, 1
        %v349 = vpop.permute.xlu0 %348
        %350 = vrot.lane.b32.xlu0 %v341, 1
        %v351 = vpop.permute.xlu0 %350
        %352 = vrot.lane.b32.xlu0 %v342, 1
        %v353 = vpop.permute.xlu0 %352
        %354 = vrot.lane.b32.xlu0 %v343, 1
        %v355 = vpop.permute.xlu0 %354
        %v356 = vsel %vm317, %v349, %v351
        %v357 = vsel %vm317, %v351, %v353
        %v358 = vsel %vm317, %v353, %v355
        %v363 = vadd.f32 %v248, %v349
        %v364 = vadd.f32 %v249, %v356
        %v365 = vadd.f32 %v250, %v357
        %v366 = vadd.f32 %v251, %v358
        %s367 = scalar_lea.vmem %s1, 48
        %v368 = vld [vmem:[%s367] sm:$0xff]
        %v369 = vmul.f32 %v368, %v216
        %s370 = scalar_lea.vmem %s2, 48
        %v371 = vld [vmem:[%s370] sm:$0xff]
        %v372 = vadd.f32 %v369, %v371
        %374 = vset.pattern.permute.xlu0 0
        %375 = vperm.xlu0 %374, %v372
        %v376 = vpop.permute.xlu0 %375
        %v378 = vmul.f32 %v376, %v211
        %v379 = vmul.f32 %v376, %v212
        %v380 = vmul.f32 %v376, %v213
        %v381 = vmul.f32 %v376, %v214
        %386 = vrot.lane.b32.xlu0 %v378, 1
        %v387 = vpop.permute.xlu0 %386
        %388 = vrot.lane.b32.xlu0 %v379, 1
        %v389 = vpop.permute.xlu0 %388
        %390 = vrot.lane.b32.xlu0 %v380, 1
        %v391 = vpop.permute.xlu0 %390
        %392 = vrot.lane.b32.xlu0 %v381, 1
        %v393 = vpop.permute.xlu0 %392
        %v394 = vsel %vm317, %v387, %v389
        %v395 = vsel %vm317, %v389, %v391
        %v396 = vsel %vm317, %v391, %v393
        %v401 = vadd.f32 %v267, %v387
        %v402 = vadd.f32 %v268, %v394
        %v403 = vadd.f32 %v269, %v395
        %v404 = vadd.f32 %v270, %v396
        %s405 = scalar_lea.vmem %s1, 56
        %v406 = vld [vmem:[%s405] sm:$0xff]
        %v407 = vmul.f32 %v406, %v216
        %s408 = scalar_lea.vmem %s2, 56
        %v409 = vld [vmem:[%s408] sm:$0xff]
        %v410 = vadd.f32 %v407, %v409
        %412 = vset.pattern.permute.xlu0 0
        %413 = vperm.xlu0 %412, %v410
        %v414 = vpop.permute.xlu0 %413
        %v416 = vmul.f32 %v414, %v211
        %v417 = vmul.f32 %v414, %v212
        %v418 = vmul.f32 %v414, %v213
        %v419 = vmul.f32 %v414, %v214
        %424 = vrot.lane.b32.xlu0 %v416, 1
        %v425 = vpop.permute.xlu0 %424
        %426 = vrot.lane.b32.xlu0 %v417, 1
        %v427 = vpop.permute.xlu0 %426
        %428 = vrot.lane.b32.xlu0 %v418, 1
        %v429 = vpop.permute.xlu0 %428
        %430 = vrot.lane.b32.xlu0 %v419, 1
        %v431 = vpop.permute.xlu0 %430
        %v432 = vsel %vm317, %v425, %v427
        %v433 = vsel %vm317, %v427, %v429
        %v434 = vsel %vm317, %v429, %v431
        %v439 = vadd.f32 %v286, %v425
        %v440 = vadd.f32 %v287, %v432
        %v441 = vadd.f32 %v288, %v433
        %v442 = vadd.f32 %v289, %v434
        %s443 = scalar_lea.vmem %s1, 64
        %v444 = vld [vmem:[%s443] sm:$0xff]
        %v445 = vmul.f32 %v444, %v216
        %s446 = scalar_lea.vmem %s2, 64
        %v447 = vld [vmem:[%s446] sm:$0xff]
        %v448 = vadd.f32 %v445, %v447
        %450 = vset.pattern.permute.xlu0 0
        %451 = vperm.xlu0 %450, %v448
        %v452 = vpop.permute.xlu0 %451
        %v454 = vmul.f32 %v452, %v211
        %v455 = vmul.f32 %v452, %v212
        %v456 = vmul.f32 %v452, %v213
        %v457 = vmul.f32 %v452, %v214
        %462 = vrot.lane.b32.xlu0 %v454, 2
        %v463 = vpop.permute.xlu0 %462
        %464 = vrot.lane.b32.xlu0 %v455, 2
        %v465 = vpop.permute.xlu0 %464
        %466 = vrot.lane.b32.xlu0 %v456, 2
        %v467 = vpop.permute.xlu0 %466
        %468 = vrot.lane.b32.xlu0 %v457, 2
        %v469 = vpop.permute.xlu0 %468
        %vm470 = vcmask 15360
        %v471 = vsel %vm470, %v463, %v465
        %v472 = vsel %vm470, %v465, %v467
        %v473 = vsel %vm470, %v467, %v469
        %v478 = vadd.f32 %v325, %v463
        %v479 = vadd.f32 %v326, %v471
        %v480 = vadd.f32 %v327, %v472
        %v481 = vadd.f32 %v328, %v473
        %s482 = scalar_lea.vmem %s1, 72
        %v483 = vld [vmem:[%s482] sm:$0xff]
        %v484 = vmul.f32 %v483, %v216
        %s485 = scalar_lea.vmem %s2, 72
        %v486 = vld [vmem:[%s485] sm:$0xff]
        %v487 = vadd.f32 %v484, %v486
        %489 = vset.pattern.permute.xlu0 0
        %490 = vperm.xlu0 %489, %v487
        %v491 = vpop.permute.xlu0 %490
        %v493 = vmul.f32 %v491, %v211
        %v494 = vmul.f32 %v491, %v212
        %v495 = vmul.f32 %v491, %v213
        %v496 = vmul.f32 %v491, %v214
        %501 = vrot.lane.b32.xlu0 %v493, 2
        %v502 = vpop.permute.xlu0 %501
        %503 = vrot.lane.b32.xlu0 %v494, 2
        %v504 = vpop.permute.xlu0 %503
        %505 = vrot.lane.b32.xlu0 %v495, 2
        %v506 = vpop.permute.xlu0 %505
        %507 = vrot.lane.b32.xlu0 %v496, 2
        %v508 = vpop.permute.xlu0 %507
        %v509 = vsel %vm470, %v502, %v504
        %v510 = vsel %vm470, %v504, %v506
        %v511 = vsel %vm470, %v506, %v508
        %v516 = vadd.f32 %v363, %v502
        %v517 = vadd.f32 %v364, %v509
        %v518 = vadd.f32 %v365, %v510
        %v519 = vadd.f32 %v366, %v511
        %s520 = scalar_lea.vmem %s1, 80
        %v521 = vld [vmem:[%s520] sm:$0xff]
        %v522 = vmul.f32 %v521, %v216
        %s523 = scalar_lea.vmem %s2, 80
        %v524 = vld [vmem:[%s523] sm:$0xff]
        %v525 = vadd.f32 %v522, %v524
        %527 = vset.pattern.permute.xlu0 0
        %528 = vperm.xlu0 %527, %v525
        %v529 = vpop.permute.xlu0 %528
        %v531 = vmul.f32 %v529, %v211
        %v532 = vmul.f32 %v529, %v212
        %v533 = vmul.f32 %v529, %v213
        %v534 = vmul.f32 %v529, %v214
        %539 = vrot.lane.b32.xlu0 %v531, 2
        %v540 = vpop.permute.xlu0 %539
        %541 = vrot.lane.b32.xlu0 %v532, 2
        %v542 = vpop.permute.xlu0 %541
        %543 = vrot.lane.b32.xlu0 %v533, 2
        %v544 = vpop.permute.xlu0 %543
        %545 = vrot.lane.b32.xlu0 %v534, 2
        %v546 = vpop.permute.xlu0 %545
        %v547 = vsel %vm470, %v540, %v542
        %v548 = vsel %vm470, %v542, %v544
        %v549 = vsel %vm470, %v544, %v546
        %v554 = vadd.f32 %v401, %v540
        %v555 = vadd.f32 %v402, %v547
        %v556 = vadd.f32 %v403, %v548
        %v557 = vadd.f32 %v404, %v549
        %s558 = scalar_lea.vmem %s1, 88
        %v559 = vld [vmem:[%s558] sm:$0xff]
        %v560 = vmul.f32 %v559, %v216
        %s561 = scalar_lea.vmem %s2, 88
        %v562 = vld [vmem:[%s561] sm:$0xff]
        %v563 = vadd.f32 %v560, %v562
        %565 = vset.pattern.permute.xlu0 0
        %566 = vperm.xlu0 %565, %v563
        %v567 = vpop.permute.xlu0 %566
        %v569 = vmul.f32 %v567, %v211
        %v570 = vmul.f32 %v567, %v212
        %v571 = vmul.f32 %v567, %v213
        %v572 = vmul.f32 %v567, %v214
        %577 = vrot.lane.b32.xlu0 %v569, 2
        %v578 = vpop.permute.xlu0 %577
        %579 = vrot.lane.b32.xlu0 %v570, 2
        %v580 = vpop.permute.xlu0 %579
        %581 = vrot.lane.b32.xlu0 %v571, 2
        %v582 = vpop.permute.xlu0 %581
        %583 = vrot.lane.b32.xlu0 %v572, 2
        %v584 = vpop.permute.xlu0 %583
        %v585 = vsel %vm470, %v578, %v580
        %v586 = vsel %vm470, %v580, %v582
        %v587 = vsel %vm470, %v582, %v584
        %v592 = vadd.f32 %v439, %v578
        %v593 = vadd.f32 %v440, %v585
        %v594 = vadd.f32 %v441, %v586
        %v595 = vadd.f32 %v442, %v587
        %s596 = scalar_lea.vmem %s1, 96
        %v597 = vld [vmem:[%s596] sm:$0xff]
        %v598 = vmul.f32 %v597, %v216
        %s599 = scalar_lea.vmem %s2, 96
        %v600 = vld [vmem:[%s599] sm:$0xff]
        %v601 = vadd.f32 %v598, %v600
        %603 = vset.pattern.permute.xlu0 0
        %604 = vperm.xlu0 %603, %v601
        %v605 = vpop.permute.xlu0 %604
        %v607 = vmul.f32 %v605, %v211
        %v608 = vmul.f32 %v605, %v212
        %v609 = vmul.f32 %v605, %v213
        %v610 = vmul.f32 %v605, %v214
        %615 = vrot.lane.b32.xlu0 %v607, 18
        %v616 = vpop.permute.xlu0 %615
        %617 = vrot.lane.b32.xlu0 %v608, 18
        %v618 = vpop.permute.xlu0 %617
        %619 = vrot.lane.b32.xlu0 %v609, 18
        %v620 = vpop.permute.xlu0 %619
        %621 = vrot.lane.b32.xlu0 %v610, 18
        %v622 = vpop.permute.xlu0 %621
        %vm623 = vcmask 146432
        %v624 = vsel %vm623, %v616, %v618
        %v625 = vsel %vm623, %v618, %v620
        %v626 = vsel %vm623, %v620, %v622
        %v631 = vadd.f32 %v478, %v616
        %v632 = vadd.f32 %v479, %v624
        %v633 = vadd.f32 %v480, %v625
        %v634 = vadd.f32 %v481, %v626
        %s635 = scalar_lea.vmem %s1, 104
        %v636 = vld [vmem:[%s635] sm:$0xff]
        %v637 = vmul.f32 %v636, %v216
        %s638 = scalar_lea.vmem %s2, 104
        %v639 = vld [vmem:[%s638] sm:$0xff]
        %v640 = vadd.f32 %v637, %v639
        %642 = vset.pattern.permute.xlu0 0
        %643 = vperm.xlu0 %642, %v640
        %v644 = vpop.permute.xlu0 %643
        %v646 = vmul.f32 %v644, %v211
        %v647 = vmul.f32 %v644, %v212
        %v648 = vmul.f32 %v644, %v213
        %v649 = vmul.f32 %v644, %v214
        %654 = vrot.lane.b32.xlu0 %v646, 18
        %v655 = vpop.permute.xlu0 %654
        %656 = vrot.lane.b32.xlu0 %v647, 18
        %v657 = vpop.permute.xlu0 %656
        %658 = vrot.lane.b32.xlu0 %v648, 18
        %v659 = vpop.permute.xlu0 %658
        %660 = vrot.lane.b32.xlu0 %v649, 18
        %v661 = vpop.permute.xlu0 %660
        %v662 = vsel %vm623, %v655, %v657
        %v663 = vsel %vm623, %v657, %v659
        %v664 = vsel %vm623, %v659, %v661
        %v669 = vadd.f32 %v516, %v655
        %v670 = vadd.f32 %v517, %v662
        %v671 = vadd.f32 %v518, %v663
        %v672 = vadd.f32 %v519, %v664
        %s673 = scalar_lea.vmem %s1, 112
        %v674 = vld [vmem:[%s673] sm:$0xff]
        %v675 = vmul.f32 %v674, %v216
        %s676 = scalar_lea.vmem %s2, 112
        %v677 = vld [vmem:[%s676] sm:$0xff]
        %v678 = vadd.f32 %v675, %v677
        %680 = vset.pattern.permute.xlu0 0
        %681 = vperm.xlu0 %680, %v678
        %v682 = vpop.permute.xlu0 %681
        %v684 = vmul.f32 %v682, %v211
        %v685 = vmul.f32 %v682, %v212
        %v686 = vmul.f32 %v682, %v213
        %v687 = vmul.f32 %v682, %v214
        %692 = vrot.lane.b32.xlu0 %v684, 18
        %v693 = vpop.permute.xlu0 %692
        %694 = vrot.lane.b32.xlu0 %v685, 18
        %v695 = vpop.permute.xlu0 %694
        %696 = vrot.lane.b32.xlu0 %v686, 18
        %v697 = vpop.permute.xlu0 %696
        %698 = vrot.lane.b32.xlu0 %v687, 18
        %v699 = vpop.permute.xlu0 %698
        %v700 = vsel %vm623, %v693, %v695
        %v701 = vsel %vm623, %v695, %v697
        %v702 = vsel %vm623, %v697, %v699
        %v707 = vadd.f32 %v554, %v693
        %v708 = vadd.f32 %v555, %v700
        %v709 = vadd.f32 %v556, %v701
        %v710 = vadd.f32 %v557, %v702
        %s711 = scalar_lea.vmem %s1, 120
        %v712 = vld [vmem:[%s711] sm:$0xff]
        %v713 = vmul.f32 %v712, %v216
        %s714 = scalar_lea.vmem %s2, 120
        %v715 = vld [vmem:[%s714] sm:$0xff]
        %v716 = vadd.f32 %v713, %v715
        %718 = vset.pattern.permute.xlu0 0
        %719 = vperm.xlu0 %718, %v716
        %v720 = vpop.permute.xlu0 %719
        %v722 = vmul.f32 %v720, %v211
        %v723 = vmul.f32 %v720, %v212
        %v724 = vmul.f32 %v720, %v213
        %v725 = vmul.f32 %v720, %v214
        %730 = vrot.lane.b32.xlu0 %v722, 18
        %v731 = vpop.permute.xlu0 %730
        %732 = vrot.lane.b32.xlu0 %v723, 18
        %v733 = vpop.permute.xlu0 %732
        %734 = vrot.lane.b32.xlu0 %v724, 18
        %v735 = vpop.permute.xlu0 %734
        %736 = vrot.lane.b32.xlu0 %v725, 18
        %v737 = vpop.permute.xlu0 %736
        %v738 = vsel %vm623, %v731, %v733
        %v739 = vsel %vm623, %v733, %v735
        %v740 = vsel %vm623, %v735, %v737
        %v745 = vadd.f32 %v592, %v731
        %v746 = vadd.f32 %v593, %v738
        %v747 = vadd.f32 %v594, %v739
        %v748 = vadd.f32 %v595, %v740
        %s749 = scalar_lea.vmem %s1, 128
        %v750 = vld [vmem:[%s749] sm:$0xff]
        %v751 = vmul.f32 %v750, %v216
        %s752 = scalar_lea.vmem %s2, 128
        %v753 = vld [vmem:[%s752] sm:$0xff]
        %v754 = vadd.f32 %v751, %v753
        %756 = vset.pattern.permute.xlu0 0
        %757 = vperm.xlu0 %756, %v754
        %v758 = vpop.permute.xlu0 %757
        %v760 = vmul.f32 %v758, %v211
        %v761 = vmul.f32 %v758, %v212
        %v762 = vmul.f32 %v758, %v213
        %v763 = vmul.f32 %v758, %v214
        %768 = vrot.lane.b32.xlu0 %v760, 19
        %v769 = vpop.permute.xlu0 %768
        %770 = vrot.lane.b32.xlu0 %v761, 19
        %v771 = vpop.permute.xlu0 %770
        %772 = vrot.lane.b32.xlu0 %v762, 19
        %v773 = vpop.permute.xlu0 %772
        %774 = vrot.lane.b32.xlu0 %v763, 19
        %v775 = vpop.permute.xlu0 %774
        %vm776 = vcmask 154624
        %v777 = vsel %vm776, %v769, %v771
        %v778 = vsel %vm776, %v771, %v773
        %v779 = vsel %vm776, %v773, %v775
        %v784 = vadd.f32 %v631, %v769
        %v785 = vadd.f32 %v632, %v777
        %v786 = vadd.f32 %v633, %v778
        %v787 = vadd.f32 %v634, %v779
        %s788 = scalar_lea.vmem %s1, 136
        %v789 = vld [vmem:[%s788] sm:$0xff]
        %v790 = vmul.f32 %v789, %v216
        %s791 = scalar_lea.vmem %s2, 136
        %v792 = vld [vmem:[%s791] sm:$0xff]
        %v793 = vadd.f32 %v790, %v792
        %795 = vset.pattern.permute.xlu0 0
        %796 = vperm.xlu0 %795, %v793
        %v797 = vpop.permute.xlu0 %796
        %v799 = vmul.f32 %v797, %v211
        %v800 = vmul.f32 %v797, %v212
        %v801 = vmul.f32 %v797, %v213
        %v802 = vmul.f32 %v797, %v214
        %807 = vrot.lane.b32.xlu0 %v799, 19
        %v808 = vpop.permute.xlu0 %807
        %809 = vrot.lane.b32.xlu0 %v800, 19
        %v810 = vpop.permute.xlu0 %809
        %811 = vrot.lane.b32.xlu0 %v801, 19
        %v812 = vpop.permute.xlu0 %811
        %813 = vrot.lane.b32.xlu0 %v802, 19
        %v814 = vpop.permute.xlu0 %813
        %v815 = vsel %vm776, %v808, %v810
        %v816 = vsel %vm776, %v810, %v812
        %v817 = vsel %vm776, %v812, %v814
        %v822 = vadd.f32 %v669, %v808
        %v823 = vadd.f32 %v670, %v815
        %v824 = vadd.f32 %v671, %v816
        %v825 = vadd.f32 %v672, %v817
        %s826 = scalar_lea.vmem %s1, 144
        %v827 = vld [vmem:[%s826] sm:$0xff]
        %v828 = vmul.f32 %v827, %v216
        %s829 = scalar_lea.vmem %s2, 144
        %v830 = vld [vmem:[%s829] sm:$0xff]
        %v831 = vadd.f32 %v828, %v830
        %833 = vset.pattern.permute.xlu0 0
        %834 = vperm.xlu0 %833, %v831
        %v835 = vpop.permute.xlu0 %834
        %v837 = vmul.f32 %v835, %v211
        %v838 = vmul.f32 %v835, %v212
        %v839 = vmul.f32 %v835, %v213
        %v840 = vmul.f32 %v835, %v214
        %845 = vrot.lane.b32.xlu0 %v837, 19
        %v846 = vpop.permute.xlu0 %845
        %847 = vrot.lane.b32.xlu0 %v838, 19
        %v848 = vpop.permute.xlu0 %847
        %849 = vrot.lane.b32.xlu0 %v839, 19
        %v850 = vpop.permute.xlu0 %849
        %851 = vrot.lane.b32.xlu0 %v840, 19
        %v852 = vpop.permute.xlu0 %851
        %v853 = vsel %vm776, %v846, %v848
        %v854 = vsel %vm776, %v848, %v850
        %v855 = vsel %vm776, %v850, %v852
        %v860 = vadd.f32 %v707, %v846
        %v861 = vadd.f32 %v708, %v853
        %v862 = vadd.f32 %v709, %v854
        %v863 = vadd.f32 %v710, %v855
        %s864 = scalar_lea.vmem %s1, 152
        %v865 = vld [vmem:[%s864] sm:$0xff]
        %v866 = vmul.f32 %v865, %v216
        %s867 = scalar_lea.vmem %s2, 152
        %v868 = vld [vmem:[%s867] sm:$0xff]
        %v869 = vadd.f32 %v866, %v868
        %871 = vset.pattern.permute.xlu0 0
        %872 = vperm.xlu0 %871, %v869
        %v873 = vpop.permute.xlu0 %872
        %v875 = vmul.f32 %v873, %v211
        %v876 = vmul.f32 %v873, %v212
        %v877 = vmul.f32 %v873, %v213
        %v878 = vmul.f32 %v873, %v214
        %883 = vrot.lane.b32.xlu0 %v875, 19
        %v884 = vpop.permute.xlu0 %883
        %885 = vrot.lane.b32.xlu0 %v876, 19
        %v886 = vpop.permute.xlu0 %885
        %887 = vrot.lane.b32.xlu0 %v877, 19
        %v888 = vpop.permute.xlu0 %887
        %889 = vrot.lane.b32.xlu0 %v878, 19
        %v890 = vpop.permute.xlu0 %889
        %v891 = vsel %vm776, %v884, %v886
        %v892 = vsel %vm776, %v886, %v888
        %v893 = vsel %vm776, %v888, %v890
        %v898 = vadd.f32 %v745, %v884
        %v899 = vadd.f32 %v746, %v891
        %v900 = vadd.f32 %v747, %v892
        %v901 = vadd.f32 %v748, %v893
        %s902 = scalar_lea.vmem %s1, 160
        %v903 = vld [vmem:[%s902] sm:$0xff]
        %v904 = vmul.f32 %v903, %v216
        %s905 = scalar_lea.vmem %s2, 160
        %v906 = vld [vmem:[%s905] sm:$0xff]
        %v907 = vadd.f32 %v904, %v906
        %909 = vset.pattern.permute.xlu0 0
        %910 = vperm.xlu0 %909, %v907
        %v911 = vpop.permute.xlu0 %910
        %v913 = vmul.f32 %v911, %v211
        %v914 = vmul.f32 %v911, %v212
        %v915 = vmul.f32 %v911, %v213
        %v916 = vmul.f32 %v911, %v214
        %921 = vrot.lane.b32.xlu0 %v913, 20
        %v922 = vpop.permute.xlu0 %921
        %923 = vrot.lane.b32.xlu0 %v914, 20
        %v924 = vpop.permute.xlu0 %923
        %925 = vrot.lane.b32.xlu0 %v915, 20
        %v926 = vpop.permute.xlu0 %925
        %927 = vrot.lane.b32.xlu0 %v916, 20
        %v928 = vpop.permute.xlu0 %927
        %vm929 = vcmask 162816
        %v930 = vsel %vm929, %v922, %v924
        %v931 = vsel %vm929, %v924, %v926
        %v932 = vsel %vm929, %v926, %v928
        %v937 = vadd.f32 %v784, %v922
        %v938 = vadd.f32 %v785, %v930
        %v939 = vadd.f32 %v786, %v931
        %v940 = vadd.f32 %v787, %v932
        %s941 = scalar_lea.vmem %s1, 168
        %v942 = vld [vmem:[%s941] sm:$0xff]
        %v943 = vmul.f32 %v942, %v216
        %s944 = scalar_lea.vmem %s2, 168
        %v945 = vld [vmem:[%s944] sm:$0xff]
        %v946 = vadd.f32 %v943, %v945
        %948 = vset.pattern.permute.xlu0 0
        %949 = vperm.xlu0 %948, %v946
        %v950 = vpop.permute.xlu0 %949
        %v952 = vmul.f32 %v950, %v211
        %v953 = vmul.f32 %v950, %v212
        %v954 = vmul.f32 %v950, %v213
        %v955 = vmul.f32 %v950, %v214
        %960 = vrot.lane.b32.xlu0 %v952, 20
        %v961 = vpop.permute.xlu0 %960
        %962 = vrot.lane.b32.xlu0 %v953, 20
        %v963 = vpop.permute.xlu0 %962
        %964 = vrot.lane.b32.xlu0 %v954, 20
        %v965 = vpop.permute.xlu0 %964
        %966 = vrot.lane.b32.xlu0 %v955, 20
        %v967 = vpop.permute.xlu0 %966
        %v968 = vsel %vm929, %v961, %v963
        %v969 = vsel %vm929, %v963, %v965
        %v970 = vsel %vm929, %v965, %v967
        %v975 = vadd.f32 %v822, %v961
        %v976 = vadd.f32 %v823, %v968
        %v977 = vadd.f32 %v824, %v969
        %v978 = vadd.f32 %v825, %v970
        %s979 = scalar_lea.vmem %s1, 176
        %v980 = vld [vmem:[%s979] sm:$0xff]
        %v981 = vmul.f32 %v980, %v216
        %s982 = scalar_lea.vmem %s2, 176
        %v983 = vld [vmem:[%s982] sm:$0xff]
        %v984 = vadd.f32 %v981, %v983
        %986 = vset.pattern.permute.xlu0 0
        %987 = vperm.xlu0 %986, %v984
        %v988 = vpop.permute.xlu0 %987
        %v990 = vmul.f32 %v988, %v211
        %v991 = vmul.f32 %v988, %v212
        %v992 = vmul.f32 %v988, %v213
        %v993 = vmul.f32 %v988, %v214
        %998 = vrot.lane.b32.xlu0 %v990, 20
        %v999 = vpop.permute.xlu0 %998
        %1000 = vrot.lane.b32.xlu0 %v991, 20
        %v1001 = vpop.permute.xlu0 %1000
        %1002 = vrot.lane.b32.xlu0 %v992, 20
        %v1003 = vpop.permute.xlu0 %1002
        %1004 = vrot.lane.b32.xlu0 %v993, 20
        %v1005 = vpop.permute.xlu0 %1004
        %v1006 = vsel %vm929, %v999, %v1001
        %v1007 = vsel %vm929, %v1001, %v1003
        %v1008 = vsel %vm929, %v1003, %v1005
        %v1013 = vadd.f32 %v860, %v999
        %v1014 = vadd.f32 %v861, %v1006
        %v1015 = vadd.f32 %v862, %v1007
        %v1016 = vadd.f32 %v863, %v1008
        %s1017 = scalar_lea.vmem %s1, 184
        %v1018 = vld [vmem:[%s1017] sm:$0xff]
        %v1019 = vmul.f32 %v1018, %v216
        %s1020 = scalar_lea.vmem %s2, 184
        %v1021 = vld [vmem:[%s1020] sm:$0xff]
        %v1022 = vadd.f32 %v1019, %v1021
        %1024 = vset.pattern.permute.xlu0 0
        %1025 = vperm.xlu0 %1024, %v1022
        %v1026 = vpop.permute.xlu0 %1025
        %v1028 = vmul.f32 %v1026, %v211
        %v1029 = vmul.f32 %v1026, %v212
        %v1030 = vmul.f32 %v1026, %v213
        %v1031 = vmul.f32 %v1026, %v214
        %1036 = vrot.lane.b32.xlu0 %v1028, 20
        %v1037 = vpop.permute.xlu0 %1036
        %1038 = vrot.lane.b32.xlu0 %v1029, 20
        %v1039 = vpop.permute.xlu0 %1038
        %1040 = vrot.lane.b32.xlu0 %v1030, 20
        %v1041 = vpop.permute.xlu0 %1040
        %1042 = vrot.lane.b32.xlu0 %v1031, 20
        %v1043 = vpop.permute.xlu0 %1042
        %v1044 = vsel %vm929, %v1037, %v1039
        %v1045 = vsel %vm929, %v1039, %v1041
        %v1046 = vsel %vm929, %v1041, %v1043
        %v1051 = vadd.f32 %v898, %v1037
        %v1052 = vadd.f32 %v899, %v1044
        %v1053 = vadd.f32 %v900, %v1045
        %v1054 = vadd.f32 %v901, %v1046
        %s1055 = scalar_lea.vmem %s1, 192
        %v1056 = vld [vmem:[%s1055] sm:$0xff]
        %v1057 = vmul.f32 %v1056, %v216
        %s1058 = scalar_lea.vmem %s2, 192
        %v1059 = vld [vmem:[%s1058] sm:$0xff]
        %v1060 = vadd.f32 %v1057, %v1059
        %1062 = vset.pattern.permute.xlu0 0
        %1063 = vperm.xlu0 %1062, %v1060
        %v1064 = vpop.permute.xlu0 %1063
        %v1066 = vmul.f32 %v1064, %v211
        %v1067 = vmul.f32 %v1064, %v212
        %v1068 = vmul.f32 %v1064, %v213
        %v1069 = vmul.f32 %v1064, %v214
        %1074 = vrot.lane.b32.xlu0 %v1066, 36
        %v1075 = vpop.permute.xlu0 %1074
        %1076 = vrot.lane.b32.xlu0 %v1067, 36
        %v1077 = vpop.permute.xlu0 %1076
        %1078 = vrot.lane.b32.xlu0 %v1068, 36
        %v1079 = vpop.permute.xlu0 %1078
        %1080 = vrot.lane.b32.xlu0 %v1069, 36
        %v1081 = vpop.permute.xlu0 %1080
        %vm1082 = vcmask 293888
        %v1083 = vsel %vm1082, %v1075, %v1077
        %v1084 = vsel %vm1082, %v1077, %v1079
        %v1085 = vsel %vm1082, %v1079, %v1081
        %v1090 = vadd.f32 %v937, %v1075
        %v1091 = vadd.f32 %v938, %v1083
        %v1092 = vadd.f32 %v939, %v1084
        %v1093 = vadd.f32 %v940, %v1085
        %s1094 = scalar_lea.vmem %s1, 200
        %v1095 = vld [vmem:[%s1094] sm:$0xff]
        %v1096 = vmul.f32 %v1095, %v216
        %s1097 = scalar_lea.vmem %s2, 200
        %v1098 = vld [vmem:[%s1097] sm:$0xff]
        %v1099 = vadd.f32 %v1096, %v1098
        %1101 = vset.pattern.permute.xlu0 0
        %1102 = vperm.xlu0 %1101, %v1099
        %v1103 = vpop.permute.xlu0 %1102
        %v1105 = vmul.f32 %v1103, %v211
        %v1106 = vmul.f32 %v1103, %v212
        %v1107 = vmul.f32 %v1103, %v213
        %v1108 = vmul.f32 %v1103, %v214
        %1113 = vrot.lane.b32.xlu0 %v1105, 36
        %v1114 = vpop.permute.xlu0 %1113
        %1115 = vrot.lane.b32.xlu0 %v1106, 36
        %v1116 = vpop.permute.xlu0 %1115
        %1117 = vrot.lane.b32.xlu0 %v1107, 36
        %v1118 = vpop.permute.xlu0 %1117
        %1119 = vrot.lane.b32.xlu0 %v1108, 36
        %v1120 = vpop.permute.xlu0 %1119
        %v1121 = vsel %vm1082, %v1114, %v1116
        %v1122 = vsel %vm1082, %v1116, %v1118
        %v1123 = vsel %vm1082, %v1118, %v1120
        %v1128 = vadd.f32 %v975, %v1114
        %v1129 = vadd.f32 %v976, %v1121
        %v1130 = vadd.f32 %v977, %v1122
        %v1131 = vadd.f32 %v978, %v1123
        %s1132 = scalar_lea.vmem %s1, 208
        %v1133 = vld [vmem:[%s1132] sm:$0xff]
        %v1134 = vmul.f32 %v1133, %v216
        %s1135 = scalar_lea.vmem %s2, 208
        %v1136 = vld [vmem:[%s1135] sm:$0xff]
        %v1137 = vadd.f32 %v1134, %v1136
        %1139 = vset.pattern.permute.xlu0 0
        %1140 = vperm.xlu0 %1139, %v1137
        %v1141 = vpop.permute.xlu0 %1140
        %v1143 = vmul.f32 %v1141, %v211
        %v1144 = vmul.f32 %v1141, %v212
        %v1145 = vmul.f32 %v1141, %v213
        %v1146 = vmul.f32 %v1141, %v214
        %1151 = vrot.lane.b32.xlu0 %v1143, 36
        %v1152 = vpop.permute.xlu0 %1151
        %1153 = vrot.lane.b32.xlu0 %v1144, 36
        %v1154 = vpop.permute.xlu0 %1153
        %1155 = vrot.lane.b32.xlu0 %v1145, 36
        %v1156 = vpop.permute.xlu0 %1155
        %1157 = vrot.lane.b32.xlu0 %v1146, 36
        %v1158 = vpop.permute.xlu0 %1157
        %v1159 = vsel %vm1082, %v1152, %v1154
        %v1160 = vsel %vm1082, %v1154, %v1156
        %v1161 = vsel %vm1082, %v1156, %v1158
        %v1166 = vadd.f32 %v1013, %v1152
        %v1167 = vadd.f32 %v1014, %v1159
        %v1168 = vadd.f32 %v1015, %v1160
        %v1169 = vadd.f32 %v1016, %v1161
        %s1170 = scalar_lea.vmem %s1, 216
        %v1171 = vld [vmem:[%s1170] sm:$0xff]
        %v1172 = vmul.f32 %v1171, %v216
        %s1173 = scalar_lea.vmem %s2, 216
        %v1174 = vld [vmem:[%s1173] sm:$0xff]
        %v1175 = vadd.f32 %v1172, %v1174
        %1177 = vset.pattern.permute.xlu0 0
        %1178 = vperm.xlu0 %1177, %v1175
        %v1179 = vpop.permute.xlu0 %1178
        %v1181 = vmul.f32 %v1179, %v211
        %v1182 = vmul.f32 %v1179, %v212
        %v1183 = vmul.f32 %v1179, %v213
        %v1184 = vmul.f32 %v1179, %v214
        %1189 = vrot.lane.b32.xlu0 %v1181, 36
        %v1190 = vpop.permute.xlu0 %1189
        %1191 = vrot.lane.b32.xlu0 %v1182, 36
        %v1192 = vpop.permute.xlu0 %1191
        %1193 = vrot.lane.b32.xlu0 %v1183, 36
        %v1194 = vpop.permute.xlu0 %1193
        %1195 = vrot.lane.b32.xlu0 %v1184, 36
        %v1196 = vpop.permute.xlu0 %1195
        %v1197 = vsel %vm1082, %v1190, %v1192
        %v1198 = vsel %vm1082, %v1192, %v1194
        %v1199 = vsel %vm1082, %v1194, %v1196
        %v1204 = vadd.f32 %v1051, %v1190
        %v1205 = vadd.f32 %v1052, %v1197
        %v1206 = vadd.f32 %v1053, %v1198
        %v1207 = vadd.f32 %v1054, %v1199
        %s1208 = scalar_lea.vmem %s1, 224
        %v1209 = vld [vmem:[%s1208] sm:$0xff]
        %v1210 = vmul.f32 %v1209, %v216
        %s1211 = scalar_lea.vmem %s2, 224
        %v1212 = vld [vmem:[%s1211] sm:$0xff]
        %v1213 = vadd.f32 %v1210, %v1212
        %1215 = vset.pattern.permute.xlu0 0
        %1216 = vperm.xlu0 %1215, %v1213
        %v1217 = vpop.permute.xlu0 %1216
        %v1219 = vmul.f32 %v1217, %v211
        %v1220 = vmul.f32 %v1217, %v212
        %v1221 = vmul.f32 %v1217, %v213
        %v1222 = vmul.f32 %v1217, %v214
        %1227 = vrot.lane.b32.xlu0 %v1219, 37
        %v1228 = vpop.permute.xlu0 %1227
        %1229 = vrot.lane.b32.xlu0 %v1220, 37
        %v1230 = vpop.permute.xlu0 %1229
        %1231 = vrot.lane.b32.xlu0 %v1221, 37
        %v1232 = vpop.permute.xlu0 %1231
        %1233 = vrot.lane.b32.xlu0 %v1222, 37
        %v1234 = vpop.permute.xlu0 %1233
        %vm1235 = vcmask 302080
        %v1236 = vsel %vm1235, %v1228, %v1230
        %v1237 = vsel %vm1235, %v1230, %v1232
        %v1238 = vsel %vm1235, %v1232, %v1234
        %v1243 = vadd.f32 %v1090, %v1228
        %v1244 = vadd.f32 %v1091, %v1236
        %v1245 = vadd.f32 %v1092, %v1237
        %v1246 = vadd.f32 %v1093, %v1238
        %s1247 = scalar_lea.vmem %s1, 232
        %v1248 = vld [vmem:[%s1247] sm:$0xff]
        %v1249 = vmul.f32 %v1248, %v216
        %s1250 = scalar_lea.vmem %s2, 232
        %v1251 = vld [vmem:[%s1250] sm:$0xff]
        %v1252 = vadd.f32 %v1249, %v1251
        %1254 = vset.pattern.permute.xlu0 0
        %1255 = vperm.xlu0 %1254, %v1252
        %v1256 = vpop.permute.xlu0 %1255
        %v1258 = vmul.f32 %v1256, %v211
        %v1259 = vmul.f32 %v1256, %v212
        %v1260 = vmul.f32 %v1256, %v213
        %v1261 = vmul.f32 %v1256, %v214
        %1266 = vrot.lane.b32.xlu0 %v1258, 37
        %v1267 = vpop.permute.xlu0 %1266
        %1268 = vrot.lane.b32.xlu0 %v1259, 37
        %v1269 = vpop.permute.xlu0 %1268
        %1270 = vrot.lane.b32.xlu0 %v1260, 37
        %v1271 = vpop.permute.xlu0 %1270
        %1272 = vrot.lane.b32.xlu0 %v1261, 37
        %v1273 = vpop.permute.xlu0 %1272
        %v1274 = vsel %vm1235, %v1267, %v1269
        %v1275 = vsel %vm1235, %v1269, %v1271
        %v1276 = vsel %vm1235, %v1271, %v1273
        %v1281 = vadd.f32 %v1128, %v1267
        %v1282 = vadd.f32 %v1129, %v1274
        %v1283 = vadd.f32 %v1130, %v1275
        %v1284 = vadd.f32 %v1131, %v1276
        %s1285 = scalar_lea.vmem %s1, 240
        %v1286 = vld [vmem:[%s1285] sm:$0xff]
        %v1287 = vmul.f32 %v1286, %v216
        %s1288 = scalar_lea.vmem %s2, 240
        %v1289 = vld [vmem:[%s1288] sm:$0xff]
        %v1290 = vadd.f32 %v1287, %v1289
        %1292 = vset.pattern.permute.xlu0 0
        %1293 = vperm.xlu0 %1292, %v1290
        %v1294 = vpop.permute.xlu0 %1293
        %v1296 = vmul.f32 %v1294, %v211
        %v1297 = vmul.f32 %v1294, %v212
        %v1298 = vmul.f32 %v1294, %v213
        %v1299 = vmul.f32 %v1294, %v214
        %1304 = vrot.lane.b32.xlu0 %v1296, 37
        %v1305 = vpop.permute.xlu0 %1304
        %1306 = vrot.lane.b32.xlu0 %v1297, 37
        %v1307 = vpop.permute.xlu0 %1306
        %1308 = vrot.lane.b32.xlu0 %v1298, 37
        %v1309 = vpop.permute.xlu0 %1308
        %1310 = vrot.lane.b32.xlu0 %v1299, 37
        %v1311 = vpop.permute.xlu0 %1310
        %v1312 = vsel %vm1235, %v1305, %v1307
        %v1313 = vsel %vm1235, %v1307, %v1309
        %v1314 = vsel %vm1235, %v1309, %v1311
        %v1319 = vadd.f32 %v1166, %v1305
        %v1320 = vadd.f32 %v1167, %v1312
        %v1321 = vadd.f32 %v1168, %v1313
        %v1322 = vadd.f32 %v1169, %v1314
        %s1323 = scalar_lea.vmem %s1, 248
        %v1324 = vld [vmem:[%s1323] sm:$0xff]
        %v1325 = vmul.f32 %v1324, %v216
        %s1326 = scalar_lea.vmem %s2, 248
        %v1327 = vld [vmem:[%s1326] sm:$0xff]
        %v1328 = vadd.f32 %v1325, %v1327
        %1330 = vset.pattern.permute.xlu0 0
        %1331 = vperm.xlu0 %1330, %v1328
        %v1332 = vpop.permute.xlu0 %1331
        %v1334 = vmul.f32 %v1332, %v211
        %v1335 = vmul.f32 %v1332, %v212
        %v1336 = vmul.f32 %v1332, %v213
        %v1337 = vmul.f32 %v1332, %v214
        %1342 = vrot.lane.b32.xlu0 %v1334, 37
        %v1343 = vpop.permute.xlu0 %1342
        %1344 = vrot.lane.b32.xlu0 %v1335, 37
        %v1345 = vpop.permute.xlu0 %1344
        %1346 = vrot.lane.b32.xlu0 %v1336, 37
        %v1347 = vpop.permute.xlu0 %1346
        %1348 = vrot.lane.b32.xlu0 %v1337, 37
        %v1349 = vpop.permute.xlu0 %1348
        %v1350 = vsel %vm1235, %v1343, %v1345
        %v1351 = vsel %vm1235, %v1345, %v1347
        %v1352 = vsel %vm1235, %v1347, %v1349
        %v1357 = vadd.f32 %v1204, %v1343
        %v1358 = vadd.f32 %v1205, %v1350
        %v1359 = vadd.f32 %v1206, %v1351
        %v1360 = vadd.f32 %v1207, %v1352
        %v1361 = vld [vmem:[%s209] sm:$0xff]
        %v1362 = vld [vmem:[%s209 + $0x8] sm:$0xff]
        %v1363 = vld [vmem:[%s209 + $0x10] sm:$0xff]
        %s1364 = scalar_lea.vmem %s1, 256
        %v1365 = vld [vmem:[%s1364] sm:$0xff]
        %v1366 = vmul.f32 %v1365, %v216
        %s1367 = scalar_lea.vmem %s2, 256
        %v1368 = vld [vmem:[%s1367] sm:$0xff]
        %v1369 = vadd.f32 %v1366, %v1368
        %1371 = vset.pattern.permute.xlu0 0
        %1372 = vperm.xlu0 %1371, %v1369
        %v1373 = vpop.permute.xlu0 %1372
        %v1375 = vmul.f32 %v1373, %v1361
        %v1376 = vmul.f32 %v1373, %v1362
        %v1377 = vmul.f32 %v1373, %v1363
        %1381 = vrot.lane.b32.xlu0 %v1375, 38
        %v1382 = vpop.permute.xlu0 %1381
        %1383 = vrot.lane.b32.xlu0 %v1376, 38
        %v1384 = vpop.permute.xlu0 %1383
        %1385 = vrot.lane.b32.xlu0 %v1377, 38
        %v1386 = vpop.permute.xlu0 %1385
        %vm1387 = vcmask 310272
        %v1388 = vsel %vm1387, %v1382, %v1384
        %v1389 = vsel %vm1387, %v1384, %v1386
        %v1394 = vadd.f32 %v1243, %v1382
        %v1395 = vadd.f32 %v1244, %v1388
        %v1396 = vadd.f32 %v1245, %v1389
        %v1397 = vadd.f32 %v1246, %v1386
        %s1398 = scalar_lea.vmem %s1, 264
        %v1399 = vld [vmem:[%s1398] sm:$0xff]
        %v1400 = vmul.f32 %v1399, %v216
        %s1401 = scalar_lea.vmem %s2, 264
        %v1402 = vld [vmem:[%s1401] sm:$0xff]
        %v1403 = vadd.f32 %v1400, %v1402
        %1405 = vset.pattern.permute.xlu0 0
        %1406 = vperm.xlu0 %1405, %v1403
        %v1407 = vpop.permute.xlu0 %1406
        %v1409 = vmul.f32 %v1407, %v1361
        %v1410 = vmul.f32 %v1407, %v1362
        %v1411 = vmul.f32 %v1407, %v1363
        %1415 = vrot.lane.b32.xlu0 %v1409, 38
        %v1416 = vpop.permute.xlu0 %1415
        %1417 = vrot.lane.b32.xlu0 %v1410, 38
        %v1418 = vpop.permute.xlu0 %1417
        %1419 = vrot.lane.b32.xlu0 %v1411, 38
        %v1420 = vpop.permute.xlu0 %1419
        %v1421 = vsel %vm1387, %v1416, %v1418
        %v1422 = vsel %vm1387, %v1418, %v1420
        %v1427 = vadd.f32 %v1281, %v1416
        %v1428 = vadd.f32 %v1282, %v1421
        %v1429 = vadd.f32 %v1283, %v1422
        %v1430 = vadd.f32 %v1284, %v1420
        %s1431 = scalar_lea.vmem %s1, 272
        %v1432 = vld [vmem:[%s1431] sm:$0xff]
        %v1433 = vmul.f32 %v1432, %v216
        %s1434 = scalar_lea.vmem %s2, 272
        %v1435 = vld [vmem:[%s1434] sm:$0xff]
        %v1436 = vadd.f32 %v1433, %v1435
        %1438 = vset.pattern.permute.xlu0 0
        %1439 = vperm.xlu0 %1438, %v1436
        %v1440 = vpop.permute.xlu0 %1439
        %v1442 = vmul.f32 %v1440, %v1361
        %v1443 = vmul.f32 %v1440, %v1362
        %v1444 = vmul.f32 %v1440, %v1363
        %1448 = vrot.lane.b32.xlu0 %v1442, 38
        %v1449 = vpop.permute.xlu0 %1448
        %1450 = vrot.lane.b32.xlu0 %v1443, 38
        %v1451 = vpop.permute.xlu0 %1450
        %1452 = vrot.lane.b32.xlu0 %v1444, 38
        %v1453 = vpop.permute.xlu0 %1452
        %v1454 = vsel %vm1387, %v1449, %v1451
        %v1455 = vsel %vm1387, %v1451, %v1453
        %v1460 = vadd.f32 %v1319, %v1449
        %v1461 = vadd.f32 %v1320, %v1454
        %v1462 = vadd.f32 %v1321, %v1455
        %v1463 = vadd.f32 %v1322, %v1453
        %s1464 = scalar_lea.vmem %s1, 280
        %v1465 = vld [vmem:[%s1464] sm:$0xff]
        %v1466 = vmul.f32 %v1465, %v216
        %s1467 = scalar_lea.vmem %s2, 280
        %v1468 = vld [vmem:[%s1467] sm:$0xff]
        %v1469 = vadd.f32 %v1466, %v1468
        %1471 = vset.pattern.permute.xlu0 0
        %1472 = vperm.xlu0 %1471, %v1469
        %v1473 = vpop.permute.xlu0 %1472
        %v1475 = vmul.f32 %v1473, %v1361
        %v1476 = vmul.f32 %v1473, %v1362
        %v1477 = vmul.f32 %v1473, %v1363
        %1481 = vrot.lane.b32.xlu0 %v1475, 38
        %v1482 = vpop.permute.xlu0 %1481
        %1483 = vrot.lane.b32.xlu0 %v1476, 38
        %v1484 = vpop.permute.xlu0 %1483
        %1485 = vrot.lane.b32.xlu0 %v1477, 38
        %v1486 = vpop.permute.xlu0 %1485
        %v1487 = vsel %vm1387, %v1482, %v1484
        %v1488 = vsel %vm1387, %v1484, %v1486
        %v1493 = vadd.f32 %v1357, %v1482
        %v1494 = vadd.f32 %v1358, %v1487
        %v1495 = vadd.f32 %v1359, %v1488
        %v1496 = vadd.f32 %v1360, %v1486
        %1501 = vrot.lane.b32.xlu0 %v1394, 90
        %v1502 = vpop.permute.xlu0 %1501
        %1503 = vrot.lane.b32.xlu0 %v1395, 90
        %v1504 = vpop.permute.xlu0 %1503
        %1505 = vrot.lane.b32.xlu0 %v1396, 90
        %v1506 = vpop.permute.xlu0 %1505
        %1507 = vrot.lane.b32.xlu0 %v1397, 90
        %v1508 = vpop.permute.xlu0 %1507
        %vm1509 = vcmask 736256
        %v1510 = vsel %vm1509, %v1502, %v1504
        %v1511 = vsel %vm1509, %v1504, %v1506
        %v1512 = vsel %vm1509, %v1506, %v1508
        %1516 = vst [vmem:[#allocation2] sm:$0xff] %v1510
        %1517 = vst [vmem:[#allocation2 + $0x8] sm:$0xff] %v1511
        %1518 = vst [vmem:[#allocation2 + $0x10] sm:$0xff] %v1512
        %v1519 = vld [vmem:[#allocation2] sm:$0x3]
        %v1520 = vld [vmem:[#allocation2 + $0x8] sm:$0x3]
        %v1521 = vld [vmem:[#allocation2 + $0x10] sm:$0x3]
        %v1522 = vld [vmem:[#allocation2] sm:$0xc]
        %v1523 = vld [vmem:[#allocation2 + $0x8] sm:$0xc]
        %v1524 = vld [vmem:[#allocation2 + $0x10] sm:$0xc]
        %v1528 = vrot.slane %v1522, 2
        %v1529 = vrot.slane %v1523, 2
        %v1530 = vrot.slane %v1524, 2
        %v1534 = vadd.f32 %v1519, %v1528
        %v1535 = vadd.f32 %v1520, %v1529
        %v1536 = vadd.f32 %v1521, %v1530
        %v1537 = vld [vmem:[#allocation2] sm:$0x30]
        %v1538 = vld [vmem:[#allocation2 + $0x8] sm:$0x30]
        %v1539 = vld [vmem:[#allocation2 + $0x10] sm:$0x30]
        %v1543 = vrot.slane %v1537, 4
        %v1544 = vrot.slane %v1538, 4
        %v1545 = vrot.slane %v1539, 4
        %v1549 = vadd.f32 %v1534, %v1543
        %v1550 = vadd.f32 %v1535, %v1544
        %v1551 = vadd.f32 %v1536, %v1545
        %v1552 = vld [vmem:[#allocation2] sm:$0xc0]
        %v1553 = vld [vmem:[#allocation2 + $0x8] sm:$0xc0]
        %v1554 = vld [vmem:[#allocation2 + $0x10] sm:$0xc0]
        %v1558 = vrot.slane %v1552, 6
        %v1559 = vrot.slane %v1553, 6
        %v1560 = vrot.slane %v1554, 6
        %v1564 = vadd.f32 %v1549, %v1558
        %v1565 = vadd.f32 %v1550, %v1559
        %v1566 = vadd.f32 %v1551, %v1560
        %1571 = vrot.lane.b32.xlu0 %v1427, 90
        %v1572 = vpop.permute.xlu0 %1571
        %1573 = vrot.lane.b32.xlu0 %v1428, 90
        %v1574 = vpop.permute.xlu0 %1573
        %1575 = vrot.lane.b32.xlu0 %v1429, 90
        %v1576 = vpop.permute.xlu0 %1575
        %1577 = vrot.lane.b32.xlu0 %v1430, 90
        %v1578 = vpop.permute.xlu0 %1577
        %v1579 = vsel %vm1509, %v1572, %v1574
        %v1580 = vsel %vm1509, %v1574, %v1576
        %v1581 = vsel %vm1509, %v1576, %v1578
        %1585 = vst [vmem:[#allocation2] sm:$0xff] %v1579
        %1586 = vst [vmem:[#allocation2 + $0x8] sm:$0xff] %v1580
        %1587 = vst [vmem:[#allocation2 + $0x10] sm:$0xff] %v1581
        %v1588 = vld [vmem:[#allocation2] sm:$0x3]
        %v1589 = vld [vmem:[#allocation2 + $0x8] sm:$0x3]
        %v1590 = vld [vmem:[#allocation2 + $0x10] sm:$0x3]
        %v1591 = vld [vmem:[#allocation2] sm:$0xc]
        %v1592 = vld [vmem:[#allocation2 + $0x8] sm:$0xc]
        %v1593 = vld [vmem:[#allocation2 + $0x10] sm:$0xc]
        %v1597 = vrot.slane %v1591, 2
        %v1598 = vrot.slane %v1592, 2
        %v1599 = vrot.slane %v1593, 2
        %v1603 = vadd.f32 %v1588, %v1597
        %v1604 = vadd.f32 %v1589, %v1598
        %v1605 = vadd.f32 %v1590, %v1599
        %v1606 = vld [vmem:[#allocation2] sm:$0x30]
        %v1607 = vld [vmem:[#allocation2 + $0x8] sm:$0x30]
        %v1608 = vld [vmem:[#allocation2 + $0x10] sm:$0x30]
        %v1612 = vrot.slane %v1606, 4
        %v1613 = vrot.slane %v1607, 4
        %v1614 = vrot.slane %v1608, 4
        %v1618 = vadd.f32 %v1603, %v1612
        %v1619 = vadd.f32 %v1604, %v1613
        %v1620 = vadd.f32 %v1605, %v1614
        %v1621 = vld [vmem:[#allocation2] sm:$0xc0]
        %v1622 = vld [vmem:[#allocation2 + $0x8] sm:$0xc0]
        %v1623 = vld [vmem:[#allocation2 + $0x10] sm:$0xc0]
        %v1627 = vrot.slane %v1621, 6
        %v1628 = vrot.slane %v1622, 6
        %v1629 = vrot.slane %v1623, 6
        %v1633 = vadd.f32 %v1618, %v1627
        %v1634 = vadd.f32 %v1619, %v1628
        %v1635 = vadd.f32 %v1620, %v1629
        %1640 = vrot.lane.b32.xlu0 %v1460, 90
        %v1641 = vpop.permute.xlu0 %1640
        %1642 = vrot.lane.b32.xlu0 %v1461, 90
        %v1643 = vpop.permute.xlu0 %1642
        %1644 = vrot.lane.b32.xlu0 %v1462, 90
        %v1645 = vpop.permute.xlu0 %1644
        %1646 = vrot.lane.b32.xlu0 %v1463, 90
        %v1647 = vpop.permute.xlu0 %1646
        %v1648 = vsel %vm1509, %v1641, %v1643
        %v1649 = vsel %vm1509, %v1643, %v1645
        %v1650 = vsel %vm1509, %v1645, %v1647
        %1654 = vst [vmem:[#allocation2] sm:$0xff] %v1648
        %1655 = vst [vmem:[#allocation2 + $0x8] sm:$0xff] %v1649
        %1656 = vst [vmem:[#allocation2 + $0x10] sm:$0xff] %v1650
        %v1657 = vld [vmem:[#allocation2] sm:$0x3]
        %v1658 = vld [vmem:[#allocation2 + $0x8] sm:$0x3]
        %v1659 = vld [vmem:[#allocation2 + $0x10] sm:$0x3]
        %v1660 = vld [vmem:[#allocation2] sm:$0xc]
        %v1661 = vld [vmem:[#allocation2 + $0x8] sm:$0xc]
        %v1662 = vld [vmem:[#allocation2 + $0x10] sm:$0xc]
        %v1666 = vrot.slane %v1660, 2
        %v1667 = vrot.slane %v1661, 2
        %v1668 = vrot.slane %v1662, 2
        %v1672 = vadd.f32 %v1657, %v1666
        %v1673 = vadd.f32 %v1658, %v1667
        %v1674 = vadd.f32 %v1659, %v1668
        %v1675 = vld [vmem:[#allocation2] sm:$0x30]
        %v1676 = vld [vmem:[#allocation2 + $0x8] sm:$0x30]
        %v1677 = vld [vmem:[#allocation2 + $0x10] sm:$0x30]
        %v1681 = vrot.slane %v1675, 4
        %v1682 = vrot.slane %v1676, 4
        %v1683 = vrot.slane %v1677, 4
        %v1687 = vadd.f32 %v1672, %v1681
        %v1688 = vadd.f32 %v1673, %v1682
        %v1689 = vadd.f32 %v1674, %v1683
        %v1690 = vld [vmem:[#allocation2] sm:$0xc0]
        %v1691 = vld [vmem:[#allocation2 + $0x8] sm:$0xc0]
        %v1692 = vld [vmem:[#allocation2 + $0x10] sm:$0xc0]
        %v1696 = vrot.slane %v1690, 6
        %v1697 = vrot.slane %v1691, 6
        %v1698 = vrot.slane %v1692, 6
        %v1702 = vadd.f32 %v1687, %v1696
        %v1703 = vadd.f32 %v1688, %v1697
        %v1704 = vadd.f32 %v1689, %v1698
        %1709 = vrot.lane.b32.xlu0 %v1493, 90
        %v1710 = vpop.permute.xlu0 %1709
        %1711 = vrot.lane.b32.xlu0 %v1494, 90
        %v1712 = vpop.permute.xlu0 %1711
        %1713 = vrot.lane.b32.xlu0 %v1495, 90
        %v1714 = vpop.permute.xlu0 %1713
        %1715 = vrot.lane.b32.xlu0 %v1496, 90
        %v1716 = vpop.permute.xlu0 %1715
        %v1717 = vsel %vm1509, %v1710, %v1712
        %v1718 = vsel %vm1509, %v1712, %v1714
        %v1719 = vsel %vm1509, %v1714, %v1716
        %1723 = vst [vmem:[#allocation2] sm:$0xff] %v1717
        %1724 = vst [vmem:[#allocation2 + $0x8] sm:$0xff] %v1718
        %1725 = vst [vmem:[#allocation2 + $0x10] sm:$0xff] %v1719
        %v1726 = vld [vmem:[#allocation2] sm:$0x3]
        %v1727 = vld [vmem:[#allocation2 + $0x8] sm:$0x3]
        %v1728 = vld [vmem:[#allocation2 + $0x10] sm:$0x3]
        %v1729 = vld [vmem:[#allocation2] sm:$0xc]
        %v1730 = vld [vmem:[#allocation2 + $0x8] sm:$0xc]
        %v1731 = vld [vmem:[#allocation2 + $0x10] sm:$0xc]
        %v1735 = vrot.slane %v1729, 2
        %v1736 = vrot.slane %v1730, 2
        %v1737 = vrot.slane %v1731, 2
        %v1741 = vadd.f32 %v1726, %v1735
        %v1742 = vadd.f32 %v1727, %v1736
        %v1743 = vadd.f32 %v1728, %v1737
        %v1744 = vld [vmem:[#allocation2] sm:$0x30]
        %v1745 = vld [vmem:[#allocation2 + $0x8] sm:$0x30]
        %v1746 = vld [vmem:[#allocation2 + $0x10] sm:$0x30]
        %v1750 = vrot.slane %v1744, 4
        %v1751 = vrot.slane %v1745, 4
        %v1752 = vrot.slane %v1746, 4
        %v1756 = vadd.f32 %v1741, %v1750
        %v1757 = vadd.f32 %v1742, %v1751
        %v1758 = vadd.f32 %v1743, %v1752
        %v1759 = vld [vmem:[#allocation2] sm:$0xc0]
        %v1760 = vld [vmem:[#allocation2 + $0x8] sm:$0xc0]
        %v1761 = vld [vmem:[#allocation2 + $0x10] sm:$0xc0]
        %v1765 = vrot.slane %v1759, 6
        %v1766 = vrot.slane %v1760, 6
        %v1767 = vrot.slane %v1761, 6
        %v1771 = vadd.f32 %v1756, %v1765
        %v1772 = vadd.f32 %v1757, %v1766
        %v1773 = vadd.f32 %v1758, %v1767
        %v1777 = vrot.slane %v1633, 6
        %v1778 = vrot.slane %v1634, 6
        %v1779 = vrot.slane %v1635, 6
        %v1786 = vrot.slane %v1702, 4
        %v1787 = vrot.slane %v1703, 4
        %v1788 = vrot.slane %v1704, 4
        %v1795 = vrot.slane %v1771, 2
        %v1796 = vrot.slane %v1772, 2
        %v1797 = vrot.slane %v1773, 2
        %vm1801 = vcmask 1041408
        %v1802 = vsel %vm1801, %v1564, %v1777
        %v1803 = vsel %vm1801, %v1565, %v1778
        %v1804 = vsel %vm1801, %v1566, %v1779
        %vm1805 = vcmask 1043456
        %v1806 = vsel %vm1805, %v1802, %v1786
        %v1807 = vsel %vm1805, %v1803, %v1787
        %v1808 = vsel %vm1805, %v1804, %v1788
        %vm1809 = vcmask 1045504
        %v1810 = vsel %vm1809, %v1806, %v1795
        %v1811 = vsel %vm1809, %v1807, %v1796
        %v1812 = vsel %vm1809, %v1808, %v1797
        %s1813 = scalar_lea.vmem %s1, 288
        %v1814 = vld [vmem:[%s1813] sm:$0xff]
        %v1815 = vmul.f32 %v1814, %v216
        %s1816 = scalar_lea.vmem %s2, 288
        %v1817 = vld [vmem:[%s1816] sm:$0xff]
        %v1818 = vadd.f32 %v1815, %v1817
        %1820 = vset.pattern.permute.xlu0 0
        %1821 = vperm.xlu0 %1820, %v1818
        %v1822 = vpop.permute.xlu0 %1821
        %v1824 = vadd.f32 %v1810, %v1822
        %v1825 = vadd.f32 %v1811, %v1822
        %v1826 = vadd.f32 %v1812, %v1822
        %1827 = vst [vmem:[%s204] sm:$0xff] %v1824
        %1828 = vst [vmem:[%s204 + $0x8] sm:$0xff] %v1825
        %1829 = vst [vmem:[%s204 + $0x10] sm:$0xff] %v1826
        %s1830 = sand.u32 %s116, 1
        %s1831 = scalar_lea.sflag [#allocation4], %s1830
        %s1832 = sand.u32 %s116, 1
        %s1833 = smul.addr %s1832, 24
        %s1834 = scalar_lea.vmem [#allocation6], %s1833
        // Predicated region
        $region41: #{tpu_custom_call.1} parent=35 // pred_check
          %p1835 = pneg %p126
        $region42: #{tpu_custom_call.1} parent=35 // pred_check_branch
          %1837 = sbr.rel (%p1835) target = $region44
        $region43: #{tpu_custom_call.1} parent=35 // pred_region
          %1839 = vsyncadd %s1831, 0
          %s1840 = smul.addr %s19, 3
          %s1841 = smul.addr %s1840, 8
          %s1842 = scalar_lea.hbm %s4, %s1841
          %s1844 = sshll.u32 %s1834, 4
          %s1845 = int_to_ptr.vmem [resolvable:$true] %s1844
          %s1846 = sshll.u32 %s1842, 4
          %s1847 = int_to_ptr.hbm [resolvable:$true] %s1846
          %1849 = dma.vmem_to_hbm [thread:$0]  %s1845, 384, %s1847, %s1831
        $region44: #{tpu_custom_call.1} parent=35 // pred_fallthru
          _
      $region36: #{tpu_custom_call.1} parent=5 // pred_fallthru
        _
      %p1850 = scmp.le.s32.totalorder 2, %s14
      // Predicated region
      $region45: #{tpu_custom_call.1} parent=5 // pred_check
        %p1851 = pneg %p1850
      $region46: #{tpu_custom_call.1} parent=5 // pred_check_branch
        %1853 = sbr.rel (%p1851) target = $region48
      $region47: #{tpu_custom_call.1} parent=5 // pred_region
        %s1854 = ssub.s32 %s14, 2
        // Predicated region
        $region49: #{tpu_custom_call.1} parent=47 // pred_check
          %p1855 = pneg %p132
        $region50: #{tpu_custom_call.1} parent=47 // pred_check_branch
          %1857 = sbr.rel (%p1855) target = $region52
        $region51: #{tpu_custom_call.1} parent=47 // pred_region
          %s1858 = sand.u32 %s117, 1
          %s1859 = scalar_lea.sflag [#allocation4], %s1858
          %s1860 = sand.u32 %s117, 1
          %s1861 = smul.addr %s1860, 24
          %s1862 = scalar_lea.vmem [#allocation6], %s1861
          %1864 = dma.done %s1859, 384
        $region52: #{tpu_custom_call.1} parent=47 // pred_fallthru
          _
      $region48: #{tpu_custom_call.1} parent=5 // pred_fallthru
        _
    $region6: #{tpu_custom_call.1} parent=1 // loop_footer
      %s18 = sadd.s32 1, %s14
    $region7: #{tpu_custom_call.1} parent=1 // loop_footer_branch
      %13 = sbr.rel target = $region3
    $region8: #{tpu_custom_call.1} parent=1 // loop_exit
      _
    %1865 = vsyncpa [#allocation4], 1
    %s1866 = scalar_lea.sflag [#allocation4], 1
    %1867 = vsyncpa %s1866, 1
    %1868 = vsyncpa [#allocation5], 1
    %s1869 = scalar_lea.sflag [#allocation5], 1
    %1870 = vsyncpa %s1869, 1

</llo_original>
